<compile_context>
chip_gen: v7x
topology: tpu7x:2x2x1
jax: 0.10.0
libtpu: 0.0.40
codegen_flags: <defaults>
</compile_context>

<pallas_src>
import jax
import jax.numpy as jnp
from jax.experimental import pallas as pl
from jax.experimental.pallas import tpu as pltpu


def _idwt_haar_kernel(ll_ref, lh_ref, hl_ref, hh_ref, o_ref):
    # Blocks: inputs (TR, W), output (TR, 4W).  Output row r is the lane-dense
    # view of two reconstructed image rows:
    #   o[r, 0:2W]   -> image row 2r   (even rows)
    #   o[r, 2W:4W]  -> image row 2r+1 (odd rows)
    TR, W = ll_ref.shape
    two_w = 2 * W
    lane_aligned = (two_w % 128) == 0

    # Compute in f32 (required on v5e VPU; cheap everywhere).  HBM traffic
    # stays in the caller's dtype.
    ll = ll_ref[...].astype(jnp.float32)
    lh = lh_ref[...].astype(jnp.float32)
    hl = hl_ref[...].astype(jnp.float32)
    hh = hh_ref[...].astype(jnp.float32)

    # ---- even output rows first (keeps peak live temporaries ~half) ----
    s = ll + lh            # vertical low-pass  -> even image rows
    t = hl + hh
    y_ee = 0.5 * (s + t)   # (even row, even col)
    y_eo = 0.5 * (s - t)   # (even row, odd  col)
    # TODO(synk): for bf16 output on v7x a pltpu.pack_elementwise-based
    # interleave could avoid the XLU relayout; stack/reshape is correct and
    # normally hides under the DMA window.
    row_e = jnp.stack([y_ee, y_eo], axis=-1).reshape(TR, two_w)
    if lane_aligned:
        o_ref[:, 0:two_w] = row_e.astype(o_ref.dtype)

    # ---- odd output rows ----
    d = ll - lh            # vertical high-pass -> odd image rows
    e = hl - hh
    y_oe = 0.5 * (d + e)   # (odd row, even col)
    y_oo = 0.5 * (d - e)   # (odd row, odd  col)
    row_o = jnp.stack([y_oe, y_oo], axis=-1).reshape(TR, two_w)
    if lane_aligned:
        o_ref[:, two_w:2 * two_w] = row_o.astype(o_ref.dtype)
    else:
        # 2W not a multiple of 128: a second slice store would start mid-vreg
        # (masked read-modify-write); do one full-width store instead.
        o_ref[...] = jnp.concatenate([row_e, row_o], axis=-1).astype(o_ref.dtype)


def _tpu_budget():
    """Generation-aware (target input-block bytes, vmem limit, min grid steps)."""
    vmem_cap = None
    try:
        vmem_cap = int(pltpu.get_tpu_info().vmem_capacity_bytes)
    except Exception:
        vmem_cap = None
    if vmem_cap is not None and vmem_cap >= 100 * 1024 * 1024:
        # v5e / v6e class: 128 MiB physical VMEM, single TensorCore.
        # Steady state ~ 2 buffers x (4 inputs + 4x-sized output) = 16x the
        # input block -> 4 MiB blocks ~= 64 MiB, comfortably under 96 MiB.
        return {
            "target_block_bytes": 4 * 1024 * 1024,
            "vmem_limit_bytes": 96 * 1024 * 1024,
            "min_steps": 2,
        }
    # v7x class (64 MiB / TensorCore) or unknown: conservative sizing, and
    # require >=8 grid steps so each of the two TensorCores gets >=4 pipelined
    # steps (prefetch / compute / writeback overlap).
    return {
        "target_block_bytes": 2 * 1024 * 1024,
        "vmem_limit_bytes": 48 * 1024 * 1024,
        "min_steps": 8,
    }


def _choose_tr(R, W, itemsize, *, target_block_bytes, min_steps):
    """Pick the row-block size TR (sublane-aligned, no divide-R requirement)."""
    align = max(8, 32 // max(1, itemsize))   # 8 for f32, 16 for bf16, 32 for int8
    if R <= align:
        return R                              # block == full dim is always legal
    row_bytes = max(1, W * itemsize)
    tr = int(target_block_bytes // row_bytes)
    if min_steps > 1:
        tr = min(tr, pl.cdiv(R, min_steps))   # keep enough steps for the pipeline
    tr = max(align, (tr // align) * align)    # sublane alignment
    tr = min(tr, pl.cdiv(R, align) * align)   # never (usefully) exceed R
    return tr


def idwt_wrapper_forward(ll, lh, hl, hh):
    """Equivalent of IDWTWrapper.forward (wave='haar', mode='zero')."""
    N, C, H, W = ll.shape
    dtype = ll.dtype
    itemsize = jnp.dtype(dtype).itemsize

    # Every (n, c, h) row of each band is independent -> flatten to (R, W).
    R = N * C * H
    llf = ll.reshape(R, W)
    lhf = lh.reshape(R, W)
    hlf = hl.reshape(R, W)
    hhf = hh.reshape(R, W)

    budget = _tpu_budget()
    TR = _choose_tr(R, W, itemsize,
                    target_block_bytes=budget["target_block_bytes"],
                    min_steps=budget["min_steps"])
    grid = (pl.cdiv(R, TR),)

    in_blk = pl.BlockSpec((TR, W), lambda r: (r, 0))
    # Lane-dense output: (R, 4W) has the same row-major flat layout as
    # (N, C, 2H, 2W).
    out_blk = pl.BlockSpec((TR, 4 * W), lambda r: (r, 0))

    cost = pl.CostEstimate(
        flops=12 * R * W,                      # ~3 VPU ops per output element
        transcendentals=0,
        bytes_accessed=8 * R * W * itemsize,   # 4 planes in + 4-plane-equiv out
    )

    out = pl.pallas_call(
        _idwt_haar_kernel,
        out_shape=jax.ShapeDtypeStruct((R, 4 * W), dtype),
        grid_spec=pltpu.PrefetchScalarGridSpec(
            num_scalar_prefetch=0,
            grid=grid,
            in_specs=[in_blk, in_blk, in_blk, in_blk],
            out_specs=out_blk,
        ),
        compiler_params=pltpu.CompilerParams(
            dimension_semantics=("parallel",),
            vmem_limit_bytes=budget["vmem_limit_bytes"],
        ),
        cost_estimate=cost,
    )(llf, lhf, hlf, hhf)

    # Free reshape: (R, 4W) -> (N, C, 2H, 2W) is the same flat layout.
    # TODO(synk): DWTInverse's odd-size output cropping is not needed here
    # (all bands share (H, W), so the reconstruction is exactly (2H, 2W)).
    return out.reshape(N, C, 2 * H, 2 * W)


def _reference_idwt(ll, lh, hl, hh):
    """Pure-JAX reference: single-level inverse Haar DWT, mode='zero'
    (pytorch_wavelets convention: yh stacked (LH, HL, HH))."""
    N, C, H, W = ll.shape
    ref = jnp.zeros((N, C, 2 * H, 2 * W), dtype=jnp.float32)
    ref = ref.at[:, :, 0::2, 0::2].set(0.5 * (ll + lh + hl + hh))
    ref = ref.at[:, :, 0::2, 1::2].set(0.5 * (ll + lh - hl - hh))
    ref = ref.at[:, :, 1::2, 0::2].set(0.5 * (ll - lh + hl - hh))
    ref = ref.at[:, :, 1::2, 1::2].set(0.5 * (ll - lh - hl + hh))
    return ref


if __name__ == "__main__":
    key = jax.random.PRNGKey(0)

    # Case 1: the module's nominal small shape.
    k1, k2, k3, k4 = jax.random.split(key, 4)
    N, C, H, W = 2, 4, 16, 16
    ll = jax.random.normal(k1, (N, C, H, W), dtype=jnp.float32)
    lh = jax.random.normal(k2, (N, C, H, W), dtype=jnp.float32)
    hl = jax.random.normal(k3, (N, C, H, W), dtype=jnp.float32)
    hh = jax.random.normal(k4, (N, C, H, W), dtype=jnp.float32)

    y = idwt_wrapper_forward(ll, lh, hl, hh)
    jax.block_until_ready(y)
    ref = _reference_idwt(ll, lh, hl, hh)
    assert y.shape == (N, C, 2 * H, 2 * W)
    assert jnp.allclose(y, ref, atol=1e-5, rtol=1e-5)

    # Case 2: awkward row count (exercises the cdiv / padded-tail path).
    k5, k6, k7, k8 = jax.random.split(jax.random.PRNGKey(1), 4)
    N2, C2, H2, W2 = 1, 3, 10, 16
    ll2 = jax.random.normal(k5, (N2, C2, H2, W2), dtype=jnp.float32)
    lh2 = jax.random.normal(k6, (N2, C2, H2, W2), dtype=jnp.float32)
    hl2 = jax.random.normal(k7, (N2, C2, H2, W2), dtype=jnp.float32)
    hh2 = jax.random.normal(k8, (N2, C2, H2, W2), dtype=jnp.float32)

    y2 = idwt_wrapper_forward(ll2, lh2, hl2, hh2)
    jax.block_until_ready(y2)
    ref2 = _reference_idwt(ll2, lh2, hl2, hh2)
    assert y2.shape == (N2, C2, 2 * H2, 2 * W2)
    assert jnp.allclose(y2, ref2, atol=1e-5, rtol=1e-5)

    print("KERNEL_OK")
</pallas_src>

<mosaic_0001>
module attributes {stable_mosaic.version = 11 : i64} {
  func.func @_idwt_haar_kernel(%arg0: i32, %arg1: memref<16x16xf32, #tpu.memory_space<vmem>>, %arg2: memref<16x16xf32, #tpu.memory_space<vmem>>, %arg3: memref<16x16xf32, #tpu.memory_space<vmem>>, %arg4: memref<16x16xf32, #tpu.memory_space<vmem>>, %arg5: memref<16x64xf32, #tpu.memory_space<vmem>>) attributes {dimension_semantics = [#tpu.dimension_semantics<parallel>], iteration_bounds = array<i64: 8>, scalar_prefetch = 0 : i64, scratch_operands = 0 : i64, tpu.core_type = #tpu.core_type<tc>, window_params = [{transform_indices = @transform_0, window_bounds = array<i64: 16, 16>}, {transform_indices = @transform_1, window_bounds = array<i64: 16, 16>}, {transform_indices = @transform_2, window_bounds = array<i64: 16, 16>}, {transform_indices = @transform_3, window_bounds = array<i64: 16, 16>}, {transform_indices = @transform_4, window_bounds = array<i64: 16, 64>}]} {
    %c0 = arith.constant 0 : index
    %c0_0 = arith.constant 0 : index
    %0 = vector.load %arg1[%c0, %c0_0] : memref<16x16xf32, #tpu.memory_space<vmem>>, vector<16x16xf32>
    %c0_1 = arith.constant 0 : index
    %c0_2 = arith.constant 0 : index
    %1 = vector.load %arg2[%c0_1, %c0_2] : memref<16x16xf32, #tpu.memory_space<vmem>>, vector<16x16xf32>
    %c0_3 = arith.constant 0 : index
    %c0_4 = arith.constant 0 : index
    %2 = vector.load %arg3[%c0_3, %c0_4] : memref<16x16xf32, #tpu.memory_space<vmem>>, vector<16x16xf32>
    %c0_5 = arith.constant 0 : index
    %c0_6 = arith.constant 0 : index
    %3 = vector.load %arg4[%c0_5, %c0_6] : memref<16x16xf32, #tpu.memory_space<vmem>>, vector<16x16xf32>
    %4 = arith.addf %0, %1 : vector<16x16xf32>
    %5 = arith.addf %2, %3 : vector<16x16xf32>
    %6 = arith.addf %4, %5 : vector<16x16xf32>
    %cst = arith.constant 5.000000e-01 : f32
    %7 = vector.broadcast %cst : f32 to vector<16x16xf32>
    %8 = arith.mulf %7, %6 : vector<16x16xf32>
    %9 = arith.subf %4, %5 : vector<16x16xf32>
    %cst_7 = arith.constant 5.000000e-01 : f32
    %10 = vector.broadcast %cst_7 : f32 to vector<16x16xf32>
    %11 = arith.mulf %10, %9 : vector<16x16xf32>
    %12 = vector.shape_cast %8 : vector<16x16xf32> to vector<16x16x1xf32>
    %13 = vector.shape_cast %11 : vector<16x16xf32> to vector<16x16x1xf32>
    %14 = tpu.concatenate %12, %13 in 2 : vector<16x16x1xf32>, vector<16x16x1xf32> -> vector<16x16x2xf32>
    %15 = vector.shape_cast %14 : vector<16x16x2xf32> to vector<16x32xf32>
    %16 = arith.subf %0, %1 : vector<16x16xf32>
    %17 = arith.subf %2, %3 : vector<16x16xf32>
    %18 = arith.addf %16, %17 : vector<16x16xf32>
    %cst_8 = arith.constant 5.000000e-01 : f32
    %19 = vector.broadcast %cst_8 : f32 to vector<16x16xf32>
    %20 = arith.mulf %19, %18 : vector<16x16xf32>
    %21 = arith.subf %16, %17 : vector<16x16xf32>
    %cst_9 = arith.constant 5.000000e-01 : f32
    %22 = vector.broadcast %cst_9 : f32 to vector<16x16xf32>
    %23 = arith.mulf %22, %21 : vector<16x16xf32>
    %24 = vector.shape_cast %20 : vector<16x16xf32> to vector<16x16x1xf32>
    %25 = vector.shape_cast %23 : vector<16x16xf32> to vector<16x16x1xf32>
    %26 = tpu.concatenate %24, %25 in 2 : vector<16x16x1xf32>, vector<16x16x1xf32> -> vector<16x16x2xf32>
    %27 = vector.shape_cast %26 : vector<16x16x2xf32> to vector<16x32xf32>
    %28 = tpu.concatenate %15, %27 in 1 : vector<16x32xf32>, vector<16x32xf32> -> vector<16x64xf32>
    %c0_10 = arith.constant 0 : index
    %c0_11 = arith.constant 0 : index
    %29 = vector.load %arg5[%c0_10, %c0_11] : memref<16x64xf32, #tpu.memory_space<vmem>>, vector<16x64xf32>
    tpu.vector_store %arg5[%c0_10, %c0_11], %28 {strides = array<i32>} : memref<16x64xf32, #tpu.memory_space<vmem>>, vector<16x64xf32>,
    return
  }
  func.func @transform_0(%arg0: i32) -> (i32, i32) {
    %c0_i32 = arith.constant 0 : i32
    %c0_i32_0 = arith.constant 0 : i32
    return %arg0, %c0_i32 : i32, i32
  }
  func.func @transform_1(%arg0: i32) -> (i32, i32) {
    %c0_i32 = arith.constant 0 : i32
    %c0_i32_0 = arith.constant 0 : i32
    return %arg0, %c0_i32 : i32, i32
  }
  func.func @transform_2(%arg0: i32) -> (i32, i32) {
    %c0_i32 = arith.constant 0 : i32
    %c0_i32_0 = arith.constant 0 : i32
    return %arg0, %c0_i32 : i32, i32
  }
  func.func @transform_3(%arg0: i32) -> (i32, i32) {
    %c0_i32 = arith.constant 0 : i32
    %c0_i32_0 = arith.constant 0 : i32
    return %arg0, %c0_i32 : i32, i32
  }
  func.func @transform_4(%arg0: i32) -> (i32, i32) {
    %c0_i32 = arith.constant 0 : i32
    %c0_i32_0 = arith.constant 0 : i32
    return %arg0, %c0_i32 : i32, i32
  }
}

</mosaic_0001>

<llo_original>
// kernel: tpu_custom_call.1
$region0: #{tpu_custom_call.1}
  #allocation0 [shape = 'u32[]', space=smem, size = 0x4, offset = 0x4, fixed_abs, tag = 'smem constant byte address 0x4 - core index']
  #allocation1 [shape = 'u32[144,128]{1,0:T(1,128)}', space=vmem, size = 0x12000, scoped, tag = 'internal scratch']
  %s0 = inlined_call_operand.vmem [shape: f32[128,16], index: 0, kind: input, shape index: {}]
  %s1 = inlined_call_operand.vmem [shape: f32[128,16], index: 1, kind: input, shape index: {}]
  %s2 = inlined_call_operand.vmem [shape: f32[128,16], index: 2, kind: input, shape index: {}]
  %s3 = inlined_call_operand.vmem [shape: f32[128,16], index: 3, kind: input, shape index: {}]
  %s4 = inlined_call_operand.vmem [shape: f32[128,64], index: 4, kind: output, shape index: {}]
  %s5 = sld [smem:[#allocation0]]
  $region49: #{tpu_custom_call.1} parent=0
    _
  %s7 = ssub.s32 1, %s5
  %s8 = scalar_select 0, %s7, %s5
  loop: start=0, step=1, limit=10
  $region2: #{tpu_custom_call.1} parent=0 // loop_pre_header
    _
  $region3: #{tpu_custom_call.1} parent=0 // loop_header
    %s10 = sphi 0, %s14
    %p11 = scmp.ge.s32.totalorder %s10, 10
    %s20 = sphi 0, %s22
    %s23 = sphi 0, %s20
    %s24 = sphi 0, %s23
    %s40 = sphi 0, %s24
    %s46 = sphi 0, %s48
    %s49 = sphi 0, %s46
    %s50 = sphi 0, %s49
    %s66 = sphi 0, %s50
    %s72 = sphi 0, %s74
    %s75 = sphi 0, %s72
    %s76 = sphi 0, %s75
    %s92 = sphi 0, %s76
    %s98 = sphi 0, %s100
    %s101 = sphi 0, %s98
    %s102 = sphi 0, %s101
    %s118 = sphi 0, %s102
    %s124 = sphi 0, %s126
    %s127 = sphi 0, %s124
    %s128 = sphi 0, %s127
    %s144 = sphi 0, %s128
  $region4: #{tpu_custom_call.1} parent=0 // loop_header_branch
    %13 = sbr.rel (%p11) target = $region8
  $region5: #{tpu_custom_call.1} parent=0 // loop_body
    %s15 = ssub.s32 %s10, 1
    %s16 = ssub.s32 %s10, 2
    %s17 = sadd.s32 %s10, 1
    %s18 = ssub.s32 %s10, %s17
    %p19 = scmp.eq.s32.totalorder %s18, 0
    %s21 = sadd.s32 %s20, 1
    %s22 = scalar_select %p19, %s20, %s21
    %p25 = pneg %p19
    %p26 = scmp.eq.s32.totalorder %s10, 7
    %p27 = por %p25, %p26
    %p28 = scmp.ne.s32.totalorder %s20, %s23
    %p29 = scmp.eq.s32.totalorder %s10, 0
    %p30 = por %p28, %p29
    %p31 = scmp.ne.s32.totalorder %s20, %s23
    %p32 = scmp.eq.s32.totalorder %s15, 7
    %p33 = por %p31, %p32
    %p34 = scmp.ne.s32.totalorder %s23, %s24
    %p35 = scmp.eq.s32.totalorder %s15, 0
    %p36 = por %p34, %p35
    %p37 = scmp.ne.s32.totalorder %s23, %s24
    %p38 = scmp.eq.s32.totalorder %s16, 7
    %p39 = por %p37, %p38
    %p41 = scmp.ne.s32.totalorder %s24, %s40
    %p42 = scmp.eq.s32.totalorder %s16, 0
    %p43 = por %p41, %p42
    %s44 = ssub.s32 %s10, %s17
    %p45 = scmp.eq.s32.totalorder %s44, 0
    %s47 = sadd.s32 %s46, 1
    %s48 = scalar_select %p45, %s46, %s47
    %p51 = pneg %p45
    %p52 = scmp.eq.s32.totalorder %s10, 7
    %p53 = por %p51, %p52
    %p54 = scmp.ne.s32.totalorder %s46, %s49
    %p55 = scmp.eq.s32.totalorder %s10, 0
    %p56 = por %p54, %p55
    %p57 = scmp.ne.s32.totalorder %s46, %s49
    %p58 = scmp.eq.s32.totalorder %s15, 7
    %p59 = por %p57, %p58
    %p60 = scmp.ne.s32.totalorder %s49, %s50
    %p61 = scmp.eq.s32.totalorder %s15, 0
    %p62 = por %p60, %p61
    %p63 = scmp.ne.s32.totalorder %s49, %s50
    %p64 = scmp.eq.s32.totalorder %s16, 7
    %p65 = por %p63, %p64
    %p67 = scmp.ne.s32.totalorder %s50, %s66
    %p68 = scmp.eq.s32.totalorder %s16, 0
    %p69 = por %p67, %p68
    %s70 = ssub.s32 %s10, %s17
    %p71 = scmp.eq.s32.totalorder %s70, 0
    %s73 = sadd.s32 %s72, 1
    %s74 = scalar_select %p71, %s72, %s73
    %p77 = pneg %p71
    %p78 = scmp.eq.s32.totalorder %s10, 7
    %p79 = por %p77, %p78
    %p80 = scmp.ne.s32.totalorder %s72, %s75
    %p81 = scmp.eq.s32.totalorder %s10, 0
    %p82 = por %p80, %p81
    %p83 = scmp.ne.s32.totalorder %s72, %s75
    %p84 = scmp.eq.s32.totalorder %s15, 7
    %p85 = por %p83, %p84
    %p86 = scmp.ne.s32.totalorder %s75, %s76
    %p87 = scmp.eq.s32.totalorder %s15, 0
    %p88 = por %p86, %p87
    %p89 = scmp.ne.s32.totalorder %s75, %s76
    %p90 = scmp.eq.s32.totalorder %s16, 7
    %p91 = por %p89, %p90
    %p93 = scmp.ne.s32.totalorder %s76, %s92
    %p94 = scmp.eq.s32.totalorder %s16, 0
    %p95 = por %p93, %p94
    %s96 = ssub.s32 %s10, %s17
    %p97 = scmp.eq.s32.totalorder %s96, 0
    %s99 = sadd.s32 %s98, 1
    %s100 = scalar_select %p97, %s98, %s99
    %p103 = pneg %p97
    %p104 = scmp.eq.s32.totalorder %s10, 7
    %p105 = por %p103, %p104
    %p106 = scmp.ne.s32.totalorder %s98, %s101
    %p107 = scmp.eq.s32.totalorder %s10, 0
    %p108 = por %p106, %p107
    %p109 = scmp.ne.s32.totalorder %s98, %s101
    %p110 = scmp.eq.s32.totalorder %s15, 7
    %p111 = por %p109, %p110
    %p112 = scmp.ne.s32.totalorder %s101, %s102
    %p113 = scmp.eq.s32.totalorder %s15, 0
    %p114 = por %p112, %p113
    %p115 = scmp.ne.s32.totalorder %s101, %s102
    %p116 = scmp.eq.s32.totalorder %s16, 7
    %p117 = por %p115, %p116
    %p119 = scmp.ne.s32.totalorder %s102, %s118
    %p120 = scmp.eq.s32.totalorder %s16, 0
    %p121 = por %p119, %p120
    %s122 = ssub.s32 %s10, %s17
    %p123 = scmp.eq.s32.totalorder %s122, 0
    %s125 = sadd.s32 %s124, 1
    %s126 = scalar_select %p123, %s124, %s125
    %p129 = pneg %p123
    %p130 = scmp.eq.s32.totalorder %s10, 7
    %p131 = por %p129, %p130
    %p132 = scmp.ne.s32.totalorder %s124, %s127
    %p133 = scmp.eq.s32.totalorder %s10, 0
    %p134 = por %p132, %p133
    %p135 = scmp.ne.s32.totalorder %s124, %s127
    %p136 = scmp.eq.s32.totalorder %s15, 7
    %p137 = por %p135, %p136
    %p138 = scmp.ne.s32.totalorder %s127, %s128
    %p139 = scmp.eq.s32.totalorder %s15, 0
    %p140 = por %p138, %p139
    %p141 = scmp.ne.s32.totalorder %s127, %s128
    %p142 = scmp.eq.s32.totalorder %s16, 7
    %p143 = por %p141, %p142
    %p145 = scmp.ne.s32.totalorder %s128, %s144
    %p146 = scmp.eq.s32.totalorder %s16, 0
    %p147 = por %p145, %p146
    %p148 = scmp.le.s32.totalorder 1, %s10
    %p149 = scmp.lt.s32.totalorder %s10, 9
    %p150 = pnand %p148, %p149
    %p151 = pneg %p150
    // Predicated region
    $region9: #{tpu_custom_call.1} parent=5 // pred_check
      _
    $region10: #{tpu_custom_call.1} parent=5 // pred_check_branch
      %153 = sbr.rel (%p150) target = $region12
    $region11: #{tpu_custom_call.1} parent=5 // pred_region
      %s154 = ssub.s32 %s10, 1
    $region12: #{tpu_custom_call.1} parent=5 // pred_fallthru
      _
    %p155 = scmp.lt.s32.totalorder %s10, 8
    // Predicated region
    $region13: #{tpu_custom_call.1} parent=5 // pred_check
      %p156 = pneg %p155
    $region14: #{tpu_custom_call.1} parent=5 // pred_check_branch
      %158 = sbr.rel (%p156) target = $region16
    $region15: #{tpu_custom_call.1} parent=5 // pred_region
      // Predicated region
      $region17: #{tpu_custom_call.1} parent=15 // pred_check
        %p159 = pneg %p30
      $region18: #{tpu_custom_call.1} parent=15 // pred_check_branch
        %161 = sbr.rel (%p159) target = $region20
      $region19: #{tpu_custom_call.1} parent=15 // pred_region
        %s162 = smul.u32 2, %s10
        %p163 = scmp.lt.s32.totalorder %s162, 15
        %s164 = scalar_select %p163, %s162, 15
        %s165 = smul.addr %s164, 8
        %s166 = scalar_lea.vmem %s0, %s165
        %s167 = smul.u32 2, %s10
      $region20: #{tpu_custom_call.1} parent=15 // pred_fallthru
        _
      // Predicated region
      $region21: #{tpu_custom_call.1} parent=15 // pred_check
        %p168 = pneg %p56
      $region22: #{tpu_custom_call.1} parent=15 // pred_check_branch
        %170 = sbr.rel (%p168) target = $region24
      $region23: #{tpu_custom_call.1} parent=15 // pred_region
        %s171 = smul.u32 2, %s10
        %p172 = scmp.lt.s32.totalorder %s171, 15
        %s173 = scalar_select %p172, %s171, 15
        %s174 = smul.addr %s173, 8
        %s175 = scalar_lea.vmem %s1, %s174
        %s176 = smul.u32 2, %s10
      $region24: #{tpu_custom_call.1} parent=15 // pred_fallthru
        _
      // Predicated region
      $region25: #{tpu_custom_call.1} parent=15 // pred_check
        %p177 = pneg %p82
      $region26: #{tpu_custom_call.1} parent=15 // pred_check_branch
        %179 = sbr.rel (%p177) target = $region28
      $region27: #{tpu_custom_call.1} parent=15 // pred_region
        %s180 = smul.u32 2, %s10
        %p181 = scmp.lt.s32.totalorder %s180, 15
        %s182 = scalar_select %p181, %s180, 15
        %s183 = smul.addr %s182, 8
        %s184 = scalar_lea.vmem %s2, %s183
        %s185 = smul.u32 2, %s10
      $region28: #{tpu_custom_call.1} parent=15 // pred_fallthru
        _
      // Predicated region
      $region29: #{tpu_custom_call.1} parent=15 // pred_check
        %p186 = pneg %p108
      $region30: #{tpu_custom_call.1} parent=15 // pred_check_branch
        %188 = sbr.rel (%p186) target = $region32
      $region31: #{tpu_custom_call.1} parent=15 // pred_region
        %s189 = smul.u32 2, %s10
        %p190 = scmp.lt.s32.totalorder %s189, 15
        %s191 = scalar_select %p190, %s189, 15
        %s192 = smul.addr %s191, 8
        %s193 = scalar_lea.vmem %s3, %s192
        %s194 = smul.u32 2, %s10
      $region32: #{tpu_custom_call.1} parent=15 // pred_fallthru
        _
    $region16: #{tpu_custom_call.1} parent=5 // pred_fallthru
      _
    %p195 = scmp.le.s32.totalorder 1, %s10
    %p196 = scmp.lt.s32.totalorder %s10, 9
    %p197 = pnand %p195, %p196
    %p198 = pneg %p197
    // Predicated region
    $region33: #{tpu_custom_call.1} parent=5 // pred_check
      _
    $region34: #{tpu_custom_call.1} parent=5 // pred_check_branch
      %200 = sbr.rel (%p197) target = $region36
    $region35: #{tpu_custom_call.1} parent=5 // pred_region
      %s201 = ssub.s32 %s10, 1
      %s202 = smul.u32 2, %s15
      %p203 = scmp.lt.s32.totalorder %s202, 15
      %s204 = scalar_select %p203, %s202, 15
      %s205 = smul.addr %s204, 8
      %s206 = scalar_lea.vmem %s0, %s205
      %p207 = pneg %p36
      %p208 = pneg %p33
      %s209 = smul.u32 2, %s15
      %p210 = scmp.lt.s32.totalorder %s209, 15
      %s211 = scalar_select %p210, %s209, 15
      %s212 = smul.addr %s211, 8
      %s213 = scalar_lea.vmem %s1, %s212
      %p214 = pneg %p62
      %p215 = pneg %p59
      %s216 = smul.u32 2, %s15
      %p217 = scmp.lt.s32.totalorder %s216, 15
      %s218 = scalar_select %p217, %s216, 15
      %s219 = smul.addr %s218, 8
      %s220 = scalar_lea.vmem %s2, %s219
      %p221 = pneg %p88
      %p222 = pneg %p85
      %s223 = smul.u32 2, %s15
      %p224 = scmp.lt.s32.totalorder %s223, 15
      %s225 = scalar_select %p224, %s223, 15
      %s226 = smul.addr %s225, 8
      %s227 = scalar_lea.vmem %s3, %s226
      %p228 = pneg %p114
      %p229 = pneg %p111
      %p230 = pneg %p140
      %p231 = pneg %p137
      %s232 = smul.u32 2, %s15
      %p233 = scmp.lt.s32.totalorder %s232, 15
      %s234 = scalar_select %p233, %s232, 15
      %s235 = smul.addr %s234, 8
      %s236 = scalar_lea.vmem %s4, %s235
      %s237 = smul.u32 2, %s15
      %p238 = scmp.lt.s32.totalorder %s237, 15
      %s239 = scalar_select %p238, %s237, 15
      %s240 = smul.addr %s239, 8
      %s241 = scalar_lea.vmem %s0, %s240
      %s242 = smul.u32 2, %s15
      %s243 = smul.u32 2, %s15
      %p244 = scmp.lt.s32.totalorder %s243, 15
      %s245 = scalar_select %p244, %s243, 15
      %s246 = smul.addr %s245, 8
      %s247 = scalar_lea.vmem %s1, %s246
      %s248 = smul.u32 2, %s15
      %s249 = smul.u32 2, %s15
      %p250 = scmp.lt.s32.totalorder %s249, 15
      %s251 = scalar_select %p250, %s249, 15
      %s252 = smul.addr %s251, 8
      %s253 = scalar_lea.vmem %s2, %s252
      %s254 = smul.u32 2, %s15
      %s255 = smul.u32 2, %s15
      %p256 = scmp.lt.s32.totalorder %s255, 15
      %s257 = scalar_select %p256, %s255, 15
      %s258 = smul.addr %s257, 8
      %s259 = scalar_lea.vmem %s3, %s258
      %s260 = smul.u32 2, %s15
      %s261 = smul.u32 2, %s15
      %p262 = scmp.lt.s32.totalorder %s261, 15
      %s263 = scalar_select %p262, %s261, 15
      %s264 = smul.addr %s263, 8
      %s265 = scalar_lea.vmem %s4, %s264
      %s266 = smul.u32 2, %s15
      %v267 = vld [vmem:[%s241] sm:$0xff]
      %v268 = vld [vmem:[%s241 + $0x8] sm:$0xff]
      %v269 = vld [vmem:[%s247] sm:$0xff]
      %v270 = vld [vmem:[%s247 + $0x8] sm:$0xff]
      %v271 = vld [vmem:[%s253] sm:$0xff]
      %v272 = vld [vmem:[%s253 + $0x8] sm:$0xff]
      %v273 = vld [vmem:[%s259] sm:$0xff]
      %v274 = vld [vmem:[%s259 + $0x8] sm:$0xff]
      %v275 = vadd.f32 %v267, %v269
      %v276 = vadd.f32 %v268, %v270
      %v277 = vadd.f32 %v271, %v273
      %v278 = vadd.f32 %v272, %v274
      %v279 = vadd.f32 %v275, %v277
      %v280 = vadd.f32 %v276, %v278
      %v281 = vmul.f32 %v279, 0.5
      %v282 = vmul.f32 %v280, 0.5
      %v283 = vsub.f32 %v275, %v277
      %v284 = vsub.f32 %v276, %v278
      %v285 = vmul.f32 %v283, 0.5
      %v286 = vmul.f32 %v284, 0.5
      %v287 = vlaneseq
      %v288 = vshrl.u32 %v287, 7
      %v289 = vsub.s32 0, %v288
      %v290 = vrot.slane %v281, %v289
      %292 = vbcast.lane.b32.xlu0 %v290, 256
      %v293 = vpop.permute.xlu0 %292
      %s295 = sor.u32 256, 8
      %296 = vbcast.lane.b32.xlu0 %v290, %s295
      %v297 = vpop.permute.xlu0 %296
      %v298 = vlaneseq
      %v299 = vshrl.u32 %v298, 7
      %v300 = vsub.s32 1, %v299
      %v301 = vrot.slane %v281, %v300
      %303 = vbcast.lane.b32.xlu0 %v301, 256
      %v304 = vpop.permute.xlu0 %303
      %s306 = sor.u32 256, 8
      %307 = vbcast.lane.b32.xlu0 %v301, %s306
      %v308 = vpop.permute.xlu0 %307
      %v309 = vlaneseq
      %v310 = vshrl.u32 %v309, 7
      %v311 = vsub.s32 2, %v310
      %v312 = vrot.slane %v281, %v311
      %314 = vbcast.lane.b32.xlu0 %v312, 256
      %v315 = vpop.permute.xlu0 %314
      %s317 = sor.u32 256, 8
      %318 = vbcast.lane.b32.xlu0 %v312, %s317
      %v319 = vpop.permute.xlu0 %318
      %v320 = vlaneseq
      %v321 = vshrl.u32 %v320, 7
      %v322 = vsub.s32 3, %v321
      %v323 = vrot.slane %v281, %v322
      %325 = vbcast.lane.b32.xlu0 %v323, 256
      %v326 = vpop.permute.xlu0 %325
      %s328 = sor.u32 256, 8
      %329 = vbcast.lane.b32.xlu0 %v323, %s328
      %v330 = vpop.permute.xlu0 %329
      %v331 = vlaneseq
      %v332 = vshrl.u32 %v331, 7
      %v333 = vsub.s32 4, %v332
      %v334 = vrot.slane %v281, %v333
      %336 = vbcast.lane.b32.xlu0 %v334, 256
      %v337 = vpop.permute.xlu0 %336
      %s339 = sor.u32 256, 8
      %340 = vbcast.lane.b32.xlu0 %v334, %s339
      %v341 = vpop.permute.xlu0 %340
      %v342 = vlaneseq
      %v343 = vshrl.u32 %v342, 7
      %v344 = vsub.s32 5, %v343
      %v345 = vrot.slane %v281, %v344
      %347 = vbcast.lane.b32.xlu0 %v345, 256
      %v348 = vpop.permute.xlu0 %347
      %s350 = sor.u32 256, 8
      %351 = vbcast.lane.b32.xlu0 %v345, %s350
      %v352 = vpop.permute.xlu0 %351
      %v353 = vlaneseq
      %v354 = vshrl.u32 %v353, 7
      %v355 = vsub.s32 6, %v354
      %v356 = vrot.slane %v281, %v355
      %358 = vbcast.lane.b32.xlu0 %v356, 256
      %v359 = vpop.permute.xlu0 %358
      %s361 = sor.u32 256, 8
      %362 = vbcast.lane.b32.xlu0 %v356, %s361
      %v363 = vpop.permute.xlu0 %362
      %v364 = vlaneseq
      %v365 = vshrl.u32 %v364, 7
      %v366 = vsub.s32 7, %v365
      %v367 = vrot.slane %v281, %v366
      %369 = vbcast.lane.b32.xlu0 %v367, 256
      %v370 = vpop.permute.xlu0 %369
      %s372 = sor.u32 256, 8
      %373 = vbcast.lane.b32.xlu0 %v367, %s372
      %v374 = vpop.permute.xlu0 %373
      %v375 = vlaneseq
      %v376 = vshrl.u32 %v375, 7
      %v377 = vsub.s32 0, %v376
      %v378 = vrot.slane %v282, %v377
      %380 = vbcast.lane.b32.xlu0 %v378, 256
      %v381 = vpop.permute.xlu0 %380
      %s383 = sor.u32 256, 8
      %384 = vbcast.lane.b32.xlu0 %v378, %s383
      %v385 = vpop.permute.xlu0 %384
      %v386 = vlaneseq
      %v387 = vshrl.u32 %v386, 7
      %v388 = vsub.s32 1, %v387
      %v389 = vrot.slane %v282, %v388
      %391 = vbcast.lane.b32.xlu0 %v389, 256
      %v392 = vpop.permute.xlu0 %391
      %s394 = sor.u32 256, 8
      %395 = vbcast.lane.b32.xlu0 %v389, %s394
      %v396 = vpop.permute.xlu0 %395
      %v397 = vlaneseq
      %v398 = vshrl.u32 %v397, 7
      %v399 = vsub.s32 2, %v398
      %v400 = vrot.slane %v282, %v399
      %402 = vbcast.lane.b32.xlu0 %v400, 256
      %v403 = vpop.permute.xlu0 %402
      %s405 = sor.u32 256, 8
      %406 = vbcast.lane.b32.xlu0 %v400, %s405
      %v407 = vpop.permute.xlu0 %406
      %v408 = vlaneseq
      %v409 = vshrl.u32 %v408, 7
      %v410 = vsub.s32 3, %v409
      %v411 = vrot.slane %v282, %v410
      %413 = vbcast.lane.b32.xlu0 %v411, 256
      %v414 = vpop.permute.xlu0 %413
      %s416 = sor.u32 256, 8
      %417 = vbcast.lane.b32.xlu0 %v411, %s416
      %v418 = vpop.permute.xlu0 %417
      %v419 = vlaneseq
      %v420 = vshrl.u32 %v419, 7
      %v421 = vsub.s32 4, %v420
      %v422 = vrot.slane %v282, %v421
      %424 = vbcast.lane.b32.xlu0 %v422, 256
      %v425 = vpop.permute.xlu0 %424
      %s427 = sor.u32 256, 8
      %428 = vbcast.lane.b32.xlu0 %v422, %s427
      %v429 = vpop.permute.xlu0 %428
      %v430 = vlaneseq
      %v431 = vshrl.u32 %v430, 7
      %v432 = vsub.s32 5, %v431
      %v433 = vrot.slane %v282, %v432
      %435 = vbcast.lane.b32.xlu0 %v433, 256
      %v436 = vpop.permute.xlu0 %435
      %s438 = sor.u32 256, 8
      %439 = vbcast.lane.b32.xlu0 %v433, %s438
      %v440 = vpop.permute.xlu0 %439
      %v441 = vlaneseq
      %v442 = vshrl.u32 %v441, 7
      %v443 = vsub.s32 6, %v442
      %v444 = vrot.slane %v282, %v443
      %446 = vbcast.lane.b32.xlu0 %v444, 256
      %v447 = vpop.permute.xlu0 %446
      %s449 = sor.u32 256, 8
      %450 = vbcast.lane.b32.xlu0 %v444, %s449
      %v451 = vpop.permute.xlu0 %450
      %v452 = vlaneseq
      %v453 = vshrl.u32 %v452, 7
      %v454 = vsub.s32 7, %v453
      %v455 = vrot.slane %v282, %v454
      %457 = vbcast.lane.b32.xlu0 %v455, 256
      %v458 = vpop.permute.xlu0 %457
      %s460 = sor.u32 256, 8
      %461 = vbcast.lane.b32.xlu0 %v455, %s460
      %v462 = vpop.permute.xlu0 %461
      %v463 = vlaneseq
      %v464 = vshrl.u32 %v463, 7
      %v465 = vsub.s32 0, %v464
      %v466 = vrot.slane %v285, %v465
      %468 = vbcast.lane.b32.xlu0 %v466, 256
      %v469 = vpop.permute.xlu0 %468
      %s471 = sor.u32 256, 8
      %472 = vbcast.lane.b32.xlu0 %v466, %s471
      %v473 = vpop.permute.xlu0 %472
      %v474 = vlaneseq
      %v475 = vshrl.u32 %v474, 7
      %v476 = vsub.s32 1, %v475
      %v477 = vrot.slane %v285, %v476
      %479 = vbcast.lane.b32.xlu0 %v477, 256
      %v480 = vpop.permute.xlu0 %479
      %s482 = sor.u32 256, 8
      %483 = vbcast.lane.b32.xlu0 %v477, %s482
      %v484 = vpop.permute.xlu0 %483
      %v485 = vlaneseq
      %v486 = vshrl.u32 %v485, 7
      %v487 = vsub.s32 2, %v486
      %v488 = vrot.slane %v285, %v487
      %490 = vbcast.lane.b32.xlu0 %v488, 256
      %v491 = vpop.permute.xlu0 %490
      %s493 = sor.u32 256, 8
      %494 = vbcast.lane.b32.xlu0 %v488, %s493
      %v495 = vpop.permute.xlu0 %494
      %v496 = vlaneseq
      %v497 = vshrl.u32 %v496, 7
      %v498 = vsub.s32 3, %v497
      %v499 = vrot.slane %v285, %v498
      %501 = vbcast.lane.b32.xlu0 %v499, 256
      %v502 = vpop.permute.xlu0 %501
      %s504 = sor.u32 256, 8
      %505 = vbcast.lane.b32.xlu0 %v499, %s504
      %v506 = vpop.permute.xlu0 %505
      %v507 = vlaneseq
      %v508 = vshrl.u32 %v507, 7
      %v509 = vsub.s32 4, %v508
      %v510 = vrot.slane %v285, %v509
      %512 = vbcast.lane.b32.xlu0 %v510, 256
      %v513 = vpop.permute.xlu0 %512
      %s515 = sor.u32 256, 8
      %516 = vbcast.lane.b32.xlu0 %v510, %s515
      %v517 = vpop.permute.xlu0 %516
      %v518 = vlaneseq
      %v519 = vshrl.u32 %v518, 7
      %v520 = vsub.s32 5, %v519
      %v521 = vrot.slane %v285, %v520
      %523 = vbcast.lane.b32.xlu0 %v521, 256
      %v524 = vpop.permute.xlu0 %523
      %s526 = sor.u32 256, 8
      %527 = vbcast.lane.b32.xlu0 %v521, %s526
      %v528 = vpop.permute.xlu0 %527
      %v529 = vlaneseq
      %v530 = vshrl.u32 %v529, 7
      %v531 = vsub.s32 6, %v530
      %v532 = vrot.slane %v285, %v531
      %534 = vbcast.lane.b32.xlu0 %v532, 256
      %v535 = vpop.permute.xlu0 %534
      %s537 = sor.u32 256, 8
      %538 = vbcast.lane.b32.xlu0 %v532, %s537
      %v539 = vpop.permute.xlu0 %538
      %v540 = vlaneseq
      %v541 = vshrl.u32 %v540, 7
      %v542 = vsub.s32 7, %v541
      %v543 = vrot.slane %v285, %v542
      %545 = vbcast.lane.b32.xlu0 %v543, 256
      %v546 = vpop.permute.xlu0 %545
      %s548 = sor.u32 256, 8
      %549 = vbcast.lane.b32.xlu0 %v543, %s548
      %v550 = vpop.permute.xlu0 %549
      %v551 = vlaneseq
      %v552 = vshrl.u32 %v551, 7
      %v553 = vsub.s32 0, %v552
      %v554 = vrot.slane %v286, %v553
      %556 = vbcast.lane.b32.xlu0 %v554, 256
      %v557 = vpop.permute.xlu0 %556
      %s559 = sor.u32 256, 8
      %560 = vbcast.lane.b32.xlu0 %v554, %s559
      %v561 = vpop.permute.xlu0 %560
      %v562 = vlaneseq
      %v563 = vshrl.u32 %v562, 7
      %v564 = vsub.s32 1, %v563
      %v565 = vrot.slane %v286, %v564
      %567 = vbcast.lane.b32.xlu0 %v565, 256
      %v568 = vpop.permute.xlu0 %567
      %s570 = sor.u32 256, 8
      %571 = vbcast.lane.b32.xlu0 %v565, %s570
      %v572 = vpop.permute.xlu0 %571
      %v573 = vlaneseq
      %v574 = vshrl.u32 %v573, 7
      %v575 = vsub.s32 2, %v574
      %v576 = vrot.slane %v286, %v575
      %578 = vbcast.lane.b32.xlu0 %v576, 256
      %v579 = vpop.permute.xlu0 %578
      %s581 = sor.u32 256, 8
      %582 = vbcast.lane.b32.xlu0 %v576, %s581
      %v583 = vpop.permute.xlu0 %582
      %v584 = vlaneseq
      %v585 = vshrl.u32 %v584, 7
      %v586 = vsub.s32 3, %v585
      %v587 = vrot.slane %v286, %v586
      %589 = vbcast.lane.b32.xlu0 %v587, 256
      %v590 = vpop.permute.xlu0 %589
      %s592 = sor.u32 256, 8
      %593 = vbcast.lane.b32.xlu0 %v587, %s592
      %v594 = vpop.permute.xlu0 %593
      %v595 = vlaneseq
      %v596 = vshrl.u32 %v595, 7
      %v597 = vsub.s32 4, %v596
      %v598 = vrot.slane %v286, %v597
      %600 = vbcast.lane.b32.xlu0 %v598, 256
      %v601 = vpop.permute.xlu0 %600
      %s603 = sor.u32 256, 8
      %604 = vbcast.lane.b32.xlu0 %v598, %s603
      %v605 = vpop.permute.xlu0 %604
      %v606 = vlaneseq
      %v607 = vshrl.u32 %v606, 7
      %v608 = vsub.s32 5, %v607
      %v609 = vrot.slane %v286, %v608
      %611 = vbcast.lane.b32.xlu0 %v609, 256
      %v612 = vpop.permute.xlu0 %611
      %s614 = sor.u32 256, 8
      %615 = vbcast.lane.b32.xlu0 %v609, %s614
      %v616 = vpop.permute.xlu0 %615
      %v617 = vlaneseq
      %v618 = vshrl.u32 %v617, 7
      %v619 = vsub.s32 6, %v618
      %v620 = vrot.slane %v286, %v619
      %622 = vbcast.lane.b32.xlu0 %v620, 256
      %v623 = vpop.permute.xlu0 %622
      %s625 = sor.u32 256, 8
      %626 = vbcast.lane.b32.xlu0 %v620, %s625
      %v627 = vpop.permute.xlu0 %626
      %v628 = vlaneseq
      %v629 = vshrl.u32 %v628, 7
      %v630 = vsub.s32 7, %v629
      %v631 = vrot.slane %v286, %v630
      %633 = vbcast.lane.b32.xlu0 %v631, 256
      %v634 = vpop.permute.xlu0 %633
      %s636 = sor.u32 256, 8
      %637 = vbcast.lane.b32.xlu0 %v631, %s636
      %v638 = vpop.permute.xlu0 %637
      %vm639 = vcmask 7168
      %v640 = vsel %vm639, %v293, %v469
      %v641 = vsel %vm639, %v297, %v473
      %v642 = vsel %vm639, %v304, %v480
      %v643 = vsel %vm639, %v308, %v484
      %v644 = vsel %vm639, %v315, %v491
      %v645 = vsel %vm639, %v319, %v495
      %v646 = vsel %vm639, %v326, %v502
      %v647 = vsel %vm639, %v330, %v506
      %v648 = vsel %vm639, %v337, %v513
      %v649 = vsel %vm639, %v341, %v517
      %v650 = vsel %vm639, %v348, %v524
      %v651 = vsel %vm639, %v352, %v528
      %v652 = vsel %vm639, %v359, %v535
      %v653 = vsel %vm639, %v363, %v539
      %v654 = vsel %vm639, %v370, %v546
      %v655 = vsel %vm639, %v374, %v550
      %v656 = vsel %vm639, %v381, %v557
      %v657 = vsel %vm639, %v385, %v561
      %v658 = vsel %vm639, %v392, %v568
      %v659 = vsel %vm639, %v396, %v572
      %v660 = vsel %vm639, %v403, %v579
      %v661 = vsel %vm639, %v407, %v583
      %v662 = vsel %vm639, %v414, %v590
      %v663 = vsel %vm639, %v418, %v594
      %v664 = vsel %vm639, %v425, %v601
      %v665 = vsel %vm639, %v429, %v605
      %v666 = vsel %vm639, %v436, %v612
      %v667 = vsel %vm639, %v440, %v616
      %v668 = vsel %vm639, %v447, %v623
      %v669 = vsel %vm639, %v451, %v627
      %v670 = vsel %vm639, %v458, %v634
      %v671 = vsel %vm639, %v462, %v638
      %v672 = vcombine.low %v640, %v644
      %v673 = vcombine.high %v640, %v644
      %v675 = vunpack.c.l.s4 1983009808
      %v676 = vunpack.c.0.s8 %v675
      %v677 = vlaneseq
      %v678 = vshrl.u32 %v677, 7
      %v679 = vsub.s32 %v676, %v678
      %v680 = vrot.slane %v672, %v679
      %v682 = vunpack.c.l.s4 1983009808
      %v683 = vunpack.c.0.s8 %v682
      %v684 = vlaneseq
      %v685 = vshrl.u32 %v684, 7
      %v686 = vsub.s32 %v683, %v685
      %v687 = vrot.slane %v673, %v686
      %v688 = vcombine.low %v642, %v646
      %v689 = vcombine.high %v642, %v646
      %v691 = vunpack.c.l.s4 1983009808
      %v692 = vunpack.c.0.s8 %v691
      %v693 = vlaneseq
      %v694 = vshrl.u32 %v693, 7
      %v695 = vsub.s32 %v692, %v694
      %v696 = vrot.slane %v688, %v695
      %v698 = vunpack.c.l.s4 1983009808
      %v699 = vunpack.c.0.s8 %v698
      %v700 = vlaneseq
      %v701 = vshrl.u32 %v700, 7
      %v702 = vsub.s32 %v699, %v701
      %v703 = vrot.slane %v689, %v702
      %v704 = vcombine.low %v648, %v652
      %v705 = vcombine.high %v648, %v652
      %v707 = vunpack.c.l.s4 1983009808
      %v708 = vunpack.c.0.s8 %v707
      %v709 = vlaneseq
      %v710 = vshrl.u32 %v709, 7
      %v711 = vsub.s32 %v708, %v710
      %v712 = vrot.slane %v704, %v711
      %v714 = vunpack.c.l.s4 1983009808
      %v715 = vunpack.c.0.s8 %v714
      %v716 = vlaneseq
      %v717 = vshrl.u32 %v716, 7
      %v718 = vsub.s32 %v715, %v717
      %v719 = vrot.slane %v705, %v718
      %v720 = vcombine.low %v650, %v654
      %v721 = vcombine.high %v650, %v654
      %v723 = vunpack.c.l.s4 1983009808
      %v724 = vunpack.c.0.s8 %v723
      %v725 = vlaneseq
      %v726 = vshrl.u32 %v725, 7
      %v727 = vsub.s32 %v724, %v726
      %v728 = vrot.slane %v720, %v727
      %v730 = vunpack.c.l.s4 1983009808
      %v731 = vunpack.c.0.s8 %v730
      %v732 = vlaneseq
      %v733 = vshrl.u32 %v732, 7
      %v734 = vsub.s32 %v731, %v733
      %v735 = vrot.slane %v721, %v734
      %v736 = vcombine.low %v680, %v696
      %v737 = vcombine.high %v680, %v696
      %v739 = vunpack.c.l.s4 1934713408
      %v740 = vunpack.c.0.s8 %v739
      %v741 = vlaneseq
      %v742 = vshrl.u32 %v741, 7
      %v743 = vsub.s32 %v740, %v742
      %v744 = vrot.slane %v736, %v743
      %v746 = vunpack.c.l.s4 1934713408
      %v747 = vunpack.c.0.s8 %v746
      %v748 = vlaneseq
      %v749 = vshrl.u32 %v748, 7
      %v750 = vsub.s32 %v747, %v749
      %v751 = vrot.slane %v737, %v750
      %v752 = vcombine.low %v687, %v703
      %v753 = vcombine.high %v687, %v703
      %v755 = vunpack.c.l.s4 1934713408
      %v756 = vunpack.c.0.s8 %v755
      %v757 = vlaneseq
      %v758 = vshrl.u32 %v757, 7
      %v759 = vsub.s32 %v756, %v758
      %v760 = vrot.slane %v752, %v759
      %v762 = vunpack.c.l.s4 1934713408
      %v763 = vunpack.c.0.s8 %v762
      %v764 = vlaneseq
      %v765 = vshrl.u32 %v764, 7
      %v766 = vsub.s32 %v763, %v765
      %v767 = vrot.slane %v753, %v766
      %v768 = vcombine.low %v712, %v728
      %v769 = vcombine.high %v712, %v728
      %v771 = vunpack.c.l.s4 1934713408
      %v772 = vunpack.c.0.s8 %v771
      %v773 = vlaneseq
      %v774 = vshrl.u32 %v773, 7
      %v775 = vsub.s32 %v772, %v774
      %v776 = vrot.slane %v768, %v775
      %v778 = vunpack.c.l.s4 1934713408
      %v779 = vunpack.c.0.s8 %v778
      %v780 = vlaneseq
      %v781 = vshrl.u32 %v780, 7
      %v782 = vsub.s32 %v779, %v781
      %v783 = vrot.slane %v769, %v782
      %v784 = vcombine.low %v719, %v735
      %v785 = vcombine.high %v719, %v735
      %v787 = vunpack.c.l.s4 1934713408
      %v788 = vunpack.c.0.s8 %v787
      %v789 = vlaneseq
      %v790 = vshrl.u32 %v789, 7
      %v791 = vsub.s32 %v788, %v790
      %v792 = vrot.slane %v784, %v791
      %v794 = vunpack.c.l.s4 1934713408
      %v795 = vunpack.c.0.s8 %v794
      %v796 = vlaneseq
      %v797 = vshrl.u32 %v796, 7
      %v798 = vsub.s32 %v795, %v797
      %v799 = vrot.slane %v785, %v798
      %v800 = vcombine.low %v744, %v776
      %v801 = vcombine.high %v744, %v776
      %v802 = vcombine.low %v751, %v783
      %v803 = vcombine.high %v751, %v783
      %v804 = vcombine.low %v760, %v792
      %v805 = vcombine.high %v760, %v792
      %v806 = vcombine.low %v767, %v799
      %v807 = vcombine.high %v767, %v799
      %v808 = vcombine.low %v656, %v660
      %v809 = vcombine.high %v656, %v660
      %v811 = vunpack.c.l.s4 1983009808
      %v812 = vunpack.c.0.s8 %v811
      %v813 = vlaneseq
      %v814 = vshrl.u32 %v813, 7
      %v815 = vsub.s32 %v812, %v814
      %v816 = vrot.slane %v808, %v815
      %v818 = vunpack.c.l.s4 1983009808
      %v819 = vunpack.c.0.s8 %v818
      %v820 = vlaneseq
      %v821 = vshrl.u32 %v820, 7
      %v822 = vsub.s32 %v819, %v821
      %v823 = vrot.slane %v809, %v822
      %v824 = vcombine.low %v658, %v662
      %v825 = vcombine.high %v658, %v662
      %v827 = vunpack.c.l.s4 1983009808
      %v828 = vunpack.c.0.s8 %v827
      %v829 = vlaneseq
      %v830 = vshrl.u32 %v829, 7
      %v831 = vsub.s32 %v828, %v830
      %v832 = vrot.slane %v824, %v831
      %v834 = vunpack.c.l.s4 1983009808
      %v835 = vunpack.c.0.s8 %v834
      %v836 = vlaneseq
      %v837 = vshrl.u32 %v836, 7
      %v838 = vsub.s32 %v835, %v837
      %v839 = vrot.slane %v825, %v838
      %v840 = vcombine.low %v664, %v668
      %v841 = vcombine.high %v664, %v668
      %v843 = vunpack.c.l.s4 1983009808
      %v844 = vunpack.c.0.s8 %v843
      %v845 = vlaneseq
      %v846 = vshrl.u32 %v845, 7
      %v847 = vsub.s32 %v844, %v846
      %v848 = vrot.slane %v840, %v847
      %v850 = vunpack.c.l.s4 1983009808
      %v851 = vunpack.c.0.s8 %v850
      %v852 = vlaneseq
      %v853 = vshrl.u32 %v852, 7
      %v854 = vsub.s32 %v851, %v853
      %v855 = vrot.slane %v841, %v854
      %v856 = vcombine.low %v666, %v670
      %v857 = vcombine.high %v666, %v670
      %v859 = vunpack.c.l.s4 1983009808
      %v860 = vunpack.c.0.s8 %v859
      %v861 = vlaneseq
      %v862 = vshrl.u32 %v861, 7
      %v863 = vsub.s32 %v860, %v862
      %v864 = vrot.slane %v856, %v863
      %v866 = vunpack.c.l.s4 1983009808
      %v867 = vunpack.c.0.s8 %v866
      %v868 = vlaneseq
      %v869 = vshrl.u32 %v868, 7
      %v870 = vsub.s32 %v867, %v869
      %v871 = vrot.slane %v857, %v870
      %v872 = vcombine.low %v816, %v832
      %v873 = vcombine.high %v816, %v832
      %v875 = vunpack.c.l.s4 1934713408
      %v876 = vunpack.c.0.s8 %v875
      %v877 = vlaneseq
      %v878 = vshrl.u32 %v877, 7
      %v879 = vsub.s32 %v876, %v878
      %v880 = vrot.slane %v872, %v879
      %v882 = vunpack.c.l.s4 1934713408
      %v883 = vunpack.c.0.s8 %v882
      %v884 = vlaneseq
      %v885 = vshrl.u32 %v884, 7
      %v886 = vsub.s32 %v883, %v885
      %v887 = vrot.slane %v873, %v886
      %v888 = vcombine.low %v823, %v839
      %v889 = vcombine.high %v823, %v839
      %v891 = vunpack.c.l.s4 1934713408
      %v892 = vunpack.c.0.s8 %v891
      %v893 = vlaneseq
      %v894 = vshrl.u32 %v893, 7
      %v895 = vsub.s32 %v892, %v894
      %v896 = vrot.slane %v888, %v895
      %v898 = vunpack.c.l.s4 1934713408
      %v899 = vunpack.c.0.s8 %v898
      %v900 = vlaneseq
      %v901 = vshrl.u32 %v900, 7
      %v902 = vsub.s32 %v899, %v901
      %v903 = vrot.slane %v889, %v902
      %v904 = vcombine.low %v848, %v864
      %v905 = vcombine.high %v848, %v864
      %v907 = vunpack.c.l.s4 1934713408
      %v908 = vunpack.c.0.s8 %v907
      %v909 = vlaneseq
      %v910 = vshrl.u32 %v909, 7
      %v911 = vsub.s32 %v908, %v910
      %v912 = vrot.slane %v904, %v911
      %v914 = vunpack.c.l.s4 1934713408
      %v915 = vunpack.c.0.s8 %v914
      %v916 = vlaneseq
      %v917 = vshrl.u32 %v916, 7
      %v918 = vsub.s32 %v915, %v917
      %v919 = vrot.slane %v905, %v918
      %v920 = vcombine.low %v855, %v871
      %v921 = vcombine.high %v855, %v871
      %v923 = vunpack.c.l.s4 1934713408
      %v924 = vunpack.c.0.s8 %v923
      %v925 = vlaneseq
      %v926 = vshrl.u32 %v925, 7
      %v927 = vsub.s32 %v924, %v926
      %v928 = vrot.slane %v920, %v927
      %v930 = vunpack.c.l.s4 1934713408
      %v931 = vunpack.c.0.s8 %v930
      %v932 = vlaneseq
      %v933 = vshrl.u32 %v932, 7
      %v934 = vsub.s32 %v931, %v933
      %v935 = vrot.slane %v921, %v934
      %v936 = vcombine.low %v880, %v912
      %v937 = vcombine.high %v880, %v912
      %v938 = vcombine.low %v887, %v919
      %v939 = vcombine.high %v887, %v919
      %v940 = vcombine.low %v896, %v928
      %v941 = vcombine.high %v896, %v928
      %v942 = vcombine.low %v903, %v935
      %v943 = vcombine.high %v903, %v935
      %v944 = vcombine.low %v641, %v645
      %v945 = vcombine.high %v641, %v645
      %v947 = vunpack.c.l.s4 1983009808
      %v948 = vunpack.c.0.s8 %v947
      %v949 = vlaneseq
      %v950 = vshrl.u32 %v949, 7
      %v951 = vsub.s32 %v948, %v950
      %v952 = vrot.slane %v944, %v951
      %v954 = vunpack.c.l.s4 1983009808
      %v955 = vunpack.c.0.s8 %v954
      %v956 = vlaneseq
      %v957 = vshrl.u32 %v956, 7
      %v958 = vsub.s32 %v955, %v957
      %v959 = vrot.slane %v945, %v958
      %v960 = vcombine.low %v643, %v647
      %v961 = vcombine.high %v643, %v647
      %v963 = vunpack.c.l.s4 1983009808
      %v964 = vunpack.c.0.s8 %v963
      %v965 = vlaneseq
      %v966 = vshrl.u32 %v965, 7
      %v967 = vsub.s32 %v964, %v966
      %v968 = vrot.slane %v960, %v967
      %v970 = vunpack.c.l.s4 1983009808
      %v971 = vunpack.c.0.s8 %v970
      %v972 = vlaneseq
      %v973 = vshrl.u32 %v972, 7
      %v974 = vsub.s32 %v971, %v973
      %v975 = vrot.slane %v961, %v974
      %v976 = vcombine.low %v649, %v653
      %v977 = vcombine.high %v649, %v653
      %v979 = vunpack.c.l.s4 1983009808
      %v980 = vunpack.c.0.s8 %v979
      %v981 = vlaneseq
      %v982 = vshrl.u32 %v981, 7
      %v983 = vsub.s32 %v980, %v982
      %v984 = vrot.slane %v976, %v983
      %v986 = vunpack.c.l.s4 1983009808
      %v987 = vunpack.c.0.s8 %v986
      %v988 = vlaneseq
      %v989 = vshrl.u32 %v988, 7
      %v990 = vsub.s32 %v987, %v989
      %v991 = vrot.slane %v977, %v990
      %v992 = vcombine.low %v651, %v655
      %v993 = vcombine.high %v651, %v655
      %v995 = vunpack.c.l.s4 1983009808
      %v996 = vunpack.c.0.s8 %v995
      %v997 = vlaneseq
      %v998 = vshrl.u32 %v997, 7
      %v999 = vsub.s32 %v996, %v998
      %v1000 = vrot.slane %v992, %v999
      %v1002 = vunpack.c.l.s4 1983009808
      %v1003 = vunpack.c.0.s8 %v1002
      %v1004 = vlaneseq
      %v1005 = vshrl.u32 %v1004, 7
      %v1006 = vsub.s32 %v1003, %v1005
      %v1007 = vrot.slane %v993, %v1006
      %v1008 = vcombine.low %v952, %v968
      %v1009 = vcombine.high %v952, %v968
      %v1011 = vunpack.c.l.s4 1934713408
      %v1012 = vunpack.c.0.s8 %v1011
      %v1013 = vlaneseq
      %v1014 = vshrl.u32 %v1013, 7
      %v1015 = vsub.s32 %v1012, %v1014
      %v1016 = vrot.slane %v1008, %v1015
      %v1018 = vunpack.c.l.s4 1934713408
      %v1019 = vunpack.c.0.s8 %v1018
      %v1020 = vlaneseq
      %v1021 = vshrl.u32 %v1020, 7
      %v1022 = vsub.s32 %v1019, %v1021
      %v1023 = vrot.slane %v1009, %v1022
      %v1024 = vcombine.low %v959, %v975
      %v1025 = vcombine.high %v959, %v975
      %v1027 = vunpack.c.l.s4 1934713408
      %v1028 = vunpack.c.0.s8 %v1027
      %v1029 = vlaneseq
      %v1030 = vshrl.u32 %v1029, 7
      %v1031 = vsub.s32 %v1028, %v1030
      %v1032 = vrot.slane %v1024, %v1031
      %v1034 = vunpack.c.l.s4 1934713408
      %v1035 = vunpack.c.0.s8 %v1034
      %v1036 = vlaneseq
      %v1037 = vshrl.u32 %v1036, 7
      %v1038 = vsub.s32 %v1035, %v1037
      %v1039 = vrot.slane %v1025, %v1038
      %v1040 = vcombine.low %v984, %v1000
      %v1041 = vcombine.high %v984, %v1000
      %v1043 = vunpack.c.l.s4 1934713408
      %v1044 = vunpack.c.0.s8 %v1043
      %v1045 = vlaneseq
      %v1046 = vshrl.u32 %v1045, 7
      %v1047 = vsub.s32 %v1044, %v1046
      %v1048 = vrot.slane %v1040, %v1047
      %v1050 = vunpack.c.l.s4 1934713408
      %v1051 = vunpack.c.0.s8 %v1050
      %v1052 = vlaneseq
      %v1053 = vshrl.u32 %v1052, 7
      %v1054 = vsub.s32 %v1051, %v1053
      %v1055 = vrot.slane %v1041, %v1054
      %v1056 = vcombine.low %v991, %v1007
      %v1057 = vcombine.high %v991, %v1007
      %v1059 = vunpack.c.l.s4 1934713408
      %v1060 = vunpack.c.0.s8 %v1059
      %v1061 = vlaneseq
      %v1062 = vshrl.u32 %v1061, 7
      %v1063 = vsub.s32 %v1060, %v1062
      %v1064 = vrot.slane %v1056, %v1063
      %v1066 = vunpack.c.l.s4 1934713408
      %v1067 = vunpack.c.0.s8 %v1066
      %v1068 = vlaneseq
      %v1069 = vshrl.u32 %v1068, 7
      %v1070 = vsub.s32 %v1067, %v1069
      %v1071 = vrot.slane %v1057, %v1070
      %v1072 = vcombine.low %v1016, %v1048
      %v1073 = vcombine.high %v1016, %v1048
      %v1074 = vcombine.low %v1023, %v1055
      %v1075 = vcombine.high %v1023, %v1055
      %v1076 = vcombine.low %v1032, %v1064
      %v1077 = vcombine.high %v1032, %v1064
      %v1078 = vcombine.low %v1039, %v1071
      %v1079 = vcombine.high %v1039, %v1071
      %v1080 = vcombine.low %v657, %v661
      %v1081 = vcombine.high %v657, %v661
      %v1083 = vunpack.c.l.s4 1983009808
      %v1084 = vunpack.c.0.s8 %v1083
      %v1085 = vlaneseq
      %v1086 = vshrl.u32 %v1085, 7
      %v1087 = vsub.s32 %v1084, %v1086
      %v1088 = vrot.slane %v1080, %v1087
      %v1090 = vunpack.c.l.s4 1983009808
      %v1091 = vunpack.c.0.s8 %v1090
      %v1092 = vlaneseq
      %v1093 = vshrl.u32 %v1092, 7
      %v1094 = vsub.s32 %v1091, %v1093
      %v1095 = vrot.slane %v1081, %v1094
      %v1096 = vcombine.low %v659, %v663
      %v1097 = vcombine.high %v659, %v663
      %v1099 = vunpack.c.l.s4 1983009808
      %v1100 = vunpack.c.0.s8 %v1099
      %v1101 = vlaneseq
      %v1102 = vshrl.u32 %v1101, 7
      %v1103 = vsub.s32 %v1100, %v1102
      %v1104 = vrot.slane %v1096, %v1103
      %v1106 = vunpack.c.l.s4 1983009808
      %v1107 = vunpack.c.0.s8 %v1106
      %v1108 = vlaneseq
      %v1109 = vshrl.u32 %v1108, 7
      %v1110 = vsub.s32 %v1107, %v1109
      %v1111 = vrot.slane %v1097, %v1110
      %v1112 = vcombine.low %v665, %v669
      %v1113 = vcombine.high %v665, %v669
      %v1115 = vunpack.c.l.s4 1983009808
      %v1116 = vunpack.c.0.s8 %v1115
      %v1117 = vlaneseq
      %v1118 = vshrl.u32 %v1117, 7
      %v1119 = vsub.s32 %v1116, %v1118
      %v1120 = vrot.slane %v1112, %v1119
      %v1122 = vunpack.c.l.s4 1983009808
      %v1123 = vunpack.c.0.s8 %v1122
      %v1124 = vlaneseq
      %v1125 = vshrl.u32 %v1124, 7
      %v1126 = vsub.s32 %v1123, %v1125
      %v1127 = vrot.slane %v1113, %v1126
      %v1128 = vcombine.low %v667, %v671
      %v1129 = vcombine.high %v667, %v671
      %v1131 = vunpack.c.l.s4 1983009808
      %v1132 = vunpack.c.0.s8 %v1131
      %v1133 = vlaneseq
      %v1134 = vshrl.u32 %v1133, 7
      %v1135 = vsub.s32 %v1132, %v1134
      %v1136 = vrot.slane %v1128, %v1135
      %v1138 = vunpack.c.l.s4 1983009808
      %v1139 = vunpack.c.0.s8 %v1138
      %v1140 = vlaneseq
      %v1141 = vshrl.u32 %v1140, 7
      %v1142 = vsub.s32 %v1139, %v1141
      %v1143 = vrot.slane %v1129, %v1142
      %v1144 = vcombine.low %v1088, %v1104
      %v1145 = vcombine.high %v1088, %v1104
      %v1147 = vunpack.c.l.s4 1934713408
      %v1148 = vunpack.c.0.s8 %v1147
      %v1149 = vlaneseq
      %v1150 = vshrl.u32 %v1149, 7
      %v1151 = vsub.s32 %v1148, %v1150
      %v1152 = vrot.slane %v1144, %v1151
      %v1154 = vunpack.c.l.s4 1934713408
      %v1155 = vunpack.c.0.s8 %v1154
      %v1156 = vlaneseq
      %v1157 = vshrl.u32 %v1156, 7
      %v1158 = vsub.s32 %v1155, %v1157
      %v1159 = vrot.slane %v1145, %v1158
      %v1160 = vcombine.low %v1095, %v1111
      %v1161 = vcombine.high %v1095, %v1111
      %v1163 = vunpack.c.l.s4 1934713408
      %v1164 = vunpack.c.0.s8 %v1163
      %v1165 = vlaneseq
      %v1166 = vshrl.u32 %v1165, 7
      %v1167 = vsub.s32 %v1164, %v1166
      %v1168 = vrot.slane %v1160, %v1167
      %v1170 = vunpack.c.l.s4 1934713408
      %v1171 = vunpack.c.0.s8 %v1170
      %v1172 = vlaneseq
      %v1173 = vshrl.u32 %v1172, 7
      %v1174 = vsub.s32 %v1171, %v1173
      %v1175 = vrot.slane %v1161, %v1174
      %v1176 = vcombine.low %v1120, %v1136
      %v1177 = vcombine.high %v1120, %v1136
      %v1179 = vunpack.c.l.s4 1934713408
      %v1180 = vunpack.c.0.s8 %v1179
      %v1181 = vlaneseq
      %v1182 = vshrl.u32 %v1181, 7
      %v1183 = vsub.s32 %v1180, %v1182
      %v1184 = vrot.slane %v1176, %v1183
      %v1186 = vunpack.c.l.s4 1934713408
      %v1187 = vunpack.c.0.s8 %v1186
      %v1188 = vlaneseq
      %v1189 = vshrl.u32 %v1188, 7
      %v1190 = vsub.s32 %v1187, %v1189
      %v1191 = vrot.slane %v1177, %v1190
      %v1192 = vcombine.low %v1127, %v1143
      %v1193 = vcombine.high %v1127, %v1143
      %v1195 = vunpack.c.l.s4 1934713408
      %v1196 = vunpack.c.0.s8 %v1195
      %v1197 = vlaneseq
      %v1198 = vshrl.u32 %v1197, 7
      %v1199 = vsub.s32 %v1196, %v1198
      %v1200 = vrot.slane %v1192, %v1199
      %v1202 = vunpack.c.l.s4 1934713408
      %v1203 = vunpack.c.0.s8 %v1202
      %v1204 = vlaneseq
      %v1205 = vshrl.u32 %v1204, 7
      %v1206 = vsub.s32 %v1203, %v1205
      %v1207 = vrot.slane %v1193, %v1206
      %v1208 = vcombine.low %v1152, %v1184
      %v1209 = vcombine.high %v1152, %v1184
      %v1210 = vcombine.low %v1159, %v1191
      %v1211 = vcombine.high %v1159, %v1191
      %v1212 = vcombine.low %v1168, %v1200
      %v1213 = vcombine.high %v1168, %v1200
      %v1214 = vcombine.low %v1175, %v1207
      %v1215 = vcombine.high %v1175, %v1207
      %1218 = vrot.lane.b32.xlu0 %v801, 2
      %v1219 = vpop.permute.xlu0 %1218
      %1220 = vrot.lane.b32.xlu0 %v937, 2
      %v1221 = vpop.permute.xlu0 %1220
      %1226 = vrot.lane.b32.xlu0 %v802, 4
      %v1227 = vpop.permute.xlu0 %1226
      %1228 = vrot.lane.b32.xlu0 %v938, 4
      %v1229 = vpop.permute.xlu0 %1228
      %1234 = vrot.lane.b32.xlu0 %v803, 6
      %v1235 = vpop.permute.xlu0 %1234
      %1236 = vrot.lane.b32.xlu0 %v939, 6
      %v1237 = vpop.permute.xlu0 %1236
      %1242 = vrot.lane.b32.xlu0 %v804, 8
      %v1243 = vpop.permute.xlu0 %1242
      %1244 = vrot.lane.b32.xlu0 %v940, 8
      %v1245 = vpop.permute.xlu0 %1244
      %1250 = vrot.lane.b32.xlu0 %v805, 10
      %v1251 = vpop.permute.xlu0 %1250
      %1252 = vrot.lane.b32.xlu0 %v941, 10
      %v1253 = vpop.permute.xlu0 %1252
      %1258 = vrot.lane.b32.xlu0 %v806, 12
      %v1259 = vpop.permute.xlu0 %1258
      %1260 = vrot.lane.b32.xlu0 %v942, 12
      %v1261 = vpop.permute.xlu0 %1260
      %1266 = vrot.lane.b32.xlu0 %v807, 14
      %v1267 = vpop.permute.xlu0 %1266
      %1268 = vrot.lane.b32.xlu0 %v943, 14
      %v1269 = vpop.permute.xlu0 %1268
      %1274 = vrot.lane.b32.xlu0 %v1072, 16
      %v1275 = vpop.permute.xlu0 %1274
      %1276 = vrot.lane.b32.xlu0 %v1208, 16
      %v1277 = vpop.permute.xlu0 %1276
      %1282 = vrot.lane.b32.xlu0 %v1073, 18
      %v1283 = vpop.permute.xlu0 %1282
      %1284 = vrot.lane.b32.xlu0 %v1209, 18
      %v1285 = vpop.permute.xlu0 %1284
      %1290 = vrot.lane.b32.xlu0 %v1074, 20
      %v1291 = vpop.permute.xlu0 %1290
      %1292 = vrot.lane.b32.xlu0 %v1210, 20
      %v1293 = vpop.permute.xlu0 %1292
      %1298 = vrot.lane.b32.xlu0 %v1075, 22
      %v1299 = vpop.permute.xlu0 %1298
      %1300 = vrot.lane.b32.xlu0 %v1211, 22
      %v1301 = vpop.permute.xlu0 %1300
      %1306 = vrot.lane.b32.xlu0 %v1076, 24
      %v1307 = vpop.permute.xlu0 %1306
      %1308 = vrot.lane.b32.xlu0 %v1212, 24
      %v1309 = vpop.permute.xlu0 %1308
      %1314 = vrot.lane.b32.xlu0 %v1077, 26
      %v1315 = vpop.permute.xlu0 %1314
      %1316 = vrot.lane.b32.xlu0 %v1213, 26
      %v1317 = vpop.permute.xlu0 %1316
      %1322 = vrot.lane.b32.xlu0 %v1078, 28
      %v1323 = vpop.permute.xlu0 %1322
      %1324 = vrot.lane.b32.xlu0 %v1214, 28
      %v1325 = vpop.permute.xlu0 %1324
      %1330 = vrot.lane.b32.xlu0 %v1079, 30
      %v1331 = vpop.permute.xlu0 %1330
      %1332 = vrot.lane.b32.xlu0 %v1215, 30
      %v1333 = vpop.permute.xlu0 %1332
      %vm1336 = vcmask 15360
      %v1337 = vsel %vm1336, %v800, %v1219
      %v1338 = vsel %vm1336, %v936, %v1221
      %vm1339 = vcmask 31744
      %v1340 = vsel %vm1339, %v1337, %v1227
      %v1341 = vsel %vm1339, %v1338, %v1229
      %vm1342 = vcmask 48128
      %v1343 = vsel %vm1342, %v1340, %v1235
      %v1344 = vsel %vm1342, %v1341, %v1237
      %vm1345 = vcmask 64512
      %v1346 = vsel %vm1345, %v1343, %v1243
      %v1347 = vsel %vm1345, %v1344, %v1245
      %vm1348 = vcmask 80896
      %v1349 = vsel %vm1348, %v1346, %v1251
      %v1350 = vsel %vm1348, %v1347, %v1253
      %vm1351 = vcmask 97280
      %v1352 = vsel %vm1351, %v1349, %v1259
      %v1353 = vsel %vm1351, %v1350, %v1261
      %vm1354 = vcmask 113664
      %v1355 = vsel %vm1354, %v1352, %v1267
      %v1356 = vsel %vm1354, %v1353, %v1269
      %vm1357 = vcmask 130048
      %v1358 = vsel %vm1357, %v1355, %v1275
      %v1359 = vsel %vm1357, %v1356, %v1277
      %vm1360 = vcmask 146432
      %v1361 = vsel %vm1360, %v1358, %v1283
      %v1362 = vsel %vm1360, %v1359, %v1285
      %vm1363 = vcmask 162816
      %v1364 = vsel %vm1363, %v1361, %v1291
      %v1365 = vsel %vm1363, %v1362, %v1293
      %vm1366 = vcmask 179200
      %v1367 = vsel %vm1366, %v1364, %v1299
      %v1368 = vsel %vm1366, %v1365, %v1301
      %vm1369 = vcmask 195584
      %v1370 = vsel %vm1369, %v1367, %v1307
      %v1371 = vsel %vm1369, %v1368, %v1309
      %vm1372 = vcmask 211968
      %v1373 = vsel %vm1372, %v1370, %v1315
      %v1374 = vsel %vm1372, %v1371, %v1317
      %vm1375 = vcmask 228352
      %v1376 = vsel %vm1375, %v1373, %v1323
      %v1377 = vsel %vm1375, %v1374, %v1325
      %vm1378 = vcmask 244736
      %v1379 = vsel %vm1378, %v1376, %v1331
      %v1380 = vsel %vm1378, %v1377, %v1333
      %v1381 = vsub.f32 %v267, %v269
      %v1382 = vsub.f32 %v268, %v270
      %v1383 = vsub.f32 %v271, %v273
      %v1384 = vsub.f32 %v272, %v274
      %v1385 = vadd.f32 %v1381, %v1383
      %v1386 = vadd.f32 %v1382, %v1384
      %v1387 = vmul.f32 %v1385, 0.5
      %v1388 = vmul.f32 %v1386, 0.5
      %v1389 = vsub.f32 %v1381, %v1383
      %v1390 = vsub.f32 %v1382, %v1384
      %v1391 = vmul.f32 %v1389, 0.5
      %v1392 = vmul.f32 %v1390, 0.5
      %v1393 = vlaneseq
      %v1394 = vshrl.u32 %v1393, 7
      %v1395 = vsub.s32 0, %v1394
      %v1396 = vrot.slane %v1387, %v1395
      %1398 = vbcast.lane.b32.xlu0 %v1396, 256
      %v1399 = vpop.permute.xlu0 %1398
      %s1401 = sor.u32 256, 8
      %1402 = vbcast.lane.b32.xlu0 %v1396, %s1401
      %v1403 = vpop.permute.xlu0 %1402
      %v1404 = vlaneseq
      %v1405 = vshrl.u32 %v1404, 7
      %v1406 = vsub.s32 1, %v1405
      %v1407 = vrot.slane %v1387, %v1406
      %1409 = vbcast.lane.b32.xlu0 %v1407, 256
      %v1410 = vpop.permute.xlu0 %1409
      %s1412 = sor.u32 256, 8
      %1413 = vbcast.lane.b32.xlu0 %v1407, %s1412
      %v1414 = vpop.permute.xlu0 %1413
      %v1415 = vlaneseq
      %v1416 = vshrl.u32 %v1415, 7
      %v1417 = vsub.s32 2, %v1416
      %v1418 = vrot.slane %v1387, %v1417
      %1420 = vbcast.lane.b32.xlu0 %v1418, 256
      %v1421 = vpop.permute.xlu0 %1420
      %s1423 = sor.u32 256, 8
      %1424 = vbcast.lane.b32.xlu0 %v1418, %s1423
      %v1425 = vpop.permute.xlu0 %1424
      %v1426 = vlaneseq
      %v1427 = vshrl.u32 %v1426, 7
      %v1428 = vsub.s32 3, %v1427
      %v1429 = vrot.slane %v1387, %v1428
      %1431 = vbcast.lane.b32.xlu0 %v1429, 256
      %v1432 = vpop.permute.xlu0 %1431
      %s1434 = sor.u32 256, 8
      %1435 = vbcast.lane.b32.xlu0 %v1429, %s1434
      %v1436 = vpop.permute.xlu0 %1435
      %v1437 = vlaneseq
      %v1438 = vshrl.u32 %v1437, 7
      %v1439 = vsub.s32 4, %v1438
      %v1440 = vrot.slane %v1387, %v1439
      %1442 = vbcast.lane.b32.xlu0 %v1440, 256
      %v1443 = vpop.permute.xlu0 %1442
      %s1445 = sor.u32 256, 8
      %1446 = vbcast.lane.b32.xlu0 %v1440, %s1445
      %v1447 = vpop.permute.xlu0 %1446
      %v1448 = vlaneseq
      %v1449 = vshrl.u32 %v1448, 7
      %v1450 = vsub.s32 5, %v1449
      %v1451 = vrot.slane %v1387, %v1450
      %1453 = vbcast.lane.b32.xlu0 %v1451, 256
      %v1454 = vpop.permute.xlu0 %1453
      %s1456 = sor.u32 256, 8
      %1457 = vbcast.lane.b32.xlu0 %v1451, %s1456
      %v1458 = vpop.permute.xlu0 %1457
      %v1459 = vlaneseq
      %v1460 = vshrl.u32 %v1459, 7
      %v1461 = vsub.s32 6, %v1460
      %v1462 = vrot.slane %v1387, %v1461
      %1464 = vbcast.lane.b32.xlu0 %v1462, 256
      %v1465 = vpop.permute.xlu0 %1464
      %s1467 = sor.u32 256, 8
      %1468 = vbcast.lane.b32.xlu0 %v1462, %s1467
      %v1469 = vpop.permute.xlu0 %1468
      %v1470 = vlaneseq
      %v1471 = vshrl.u32 %v1470, 7
      %v1472 = vsub.s32 7, %v1471
      %v1473 = vrot.slane %v1387, %v1472
      %1475 = vbcast.lane.b32.xlu0 %v1473, 256
      %v1476 = vpop.permute.xlu0 %1475
      %s1478 = sor.u32 256, 8
      %1479 = vbcast.lane.b32.xlu0 %v1473, %s1478
      %v1480 = vpop.permute.xlu0 %1479
      %v1481 = vlaneseq
      %v1482 = vshrl.u32 %v1481, 7
      %v1483 = vsub.s32 0, %v1482
      %v1484 = vrot.slane %v1388, %v1483
      %1486 = vbcast.lane.b32.xlu0 %v1484, 256
      %v1487 = vpop.permute.xlu0 %1486
      %s1489 = sor.u32 256, 8
      %1490 = vbcast.lane.b32.xlu0 %v1484, %s1489
      %v1491 = vpop.permute.xlu0 %1490
      %v1492 = vlaneseq
      %v1493 = vshrl.u32 %v1492, 7
      %v1494 = vsub.s32 1, %v1493
      %v1495 = vrot.slane %v1388, %v1494
      %1497 = vbcast.lane.b32.xlu0 %v1495, 256
      %v1498 = vpop.permute.xlu0 %1497
      %s1500 = sor.u32 256, 8
      %1501 = vbcast.lane.b32.xlu0 %v1495, %s1500
      %v1502 = vpop.permute.xlu0 %1501
      %v1503 = vlaneseq
      %v1504 = vshrl.u32 %v1503, 7
      %v1505 = vsub.s32 2, %v1504
      %v1506 = vrot.slane %v1388, %v1505
      %1508 = vbcast.lane.b32.xlu0 %v1506, 256
      %v1509 = vpop.permute.xlu0 %1508
      %s1511 = sor.u32 256, 8
      %1512 = vbcast.lane.b32.xlu0 %v1506, %s1511
      %v1513 = vpop.permute.xlu0 %1512
      %v1514 = vlaneseq
      %v1515 = vshrl.u32 %v1514, 7
      %v1516 = vsub.s32 3, %v1515
      %v1517 = vrot.slane %v1388, %v1516
      %1519 = vbcast.lane.b32.xlu0 %v1517, 256
      %v1520 = vpop.permute.xlu0 %1519
      %s1522 = sor.u32 256, 8
      %1523 = vbcast.lane.b32.xlu0 %v1517, %s1522
      %v1524 = vpop.permute.xlu0 %1523
      %v1525 = vlaneseq
      %v1526 = vshrl.u32 %v1525, 7
      %v1527 = vsub.s32 4, %v1526
      %v1528 = vrot.slane %v1388, %v1527
      %1530 = vbcast.lane.b32.xlu0 %v1528, 256
      %v1531 = vpop.permute.xlu0 %1530
      %s1533 = sor.u32 256, 8
      %1534 = vbcast.lane.b32.xlu0 %v1528, %s1533
      %v1535 = vpop.permute.xlu0 %1534
      %v1536 = vlaneseq
      %v1537 = vshrl.u32 %v1536, 7
      %v1538 = vsub.s32 5, %v1537
      %v1539 = vrot.slane %v1388, %v1538
      %1541 = vbcast.lane.b32.xlu0 %v1539, 256
      %v1542 = vpop.permute.xlu0 %1541
      %s1544 = sor.u32 256, 8
      %1545 = vbcast.lane.b32.xlu0 %v1539, %s1544
      %v1546 = vpop.permute.xlu0 %1545
      %v1547 = vlaneseq
      %v1548 = vshrl.u32 %v1547, 7
      %v1549 = vsub.s32 6, %v1548
      %v1550 = vrot.slane %v1388, %v1549
      %1552 = vbcast.lane.b32.xlu0 %v1550, 256
      %v1553 = vpop.permute.xlu0 %1552
      %s1555 = sor.u32 256, 8
      %1556 = vbcast.lane.b32.xlu0 %v1550, %s1555
      %v1557 = vpop.permute.xlu0 %1556
      %v1558 = vlaneseq
      %v1559 = vshrl.u32 %v1558, 7
      %v1560 = vsub.s32 7, %v1559
      %v1561 = vrot.slane %v1388, %v1560
      %1563 = vbcast.lane.b32.xlu0 %v1561, 256
      %v1564 = vpop.permute.xlu0 %1563
      %s1566 = sor.u32 256, 8
      %1567 = vbcast.lane.b32.xlu0 %v1561, %s1566
      %v1568 = vpop.permute.xlu0 %1567
      %v1569 = vlaneseq
      %v1570 = vshrl.u32 %v1569, 7
      %v1571 = vsub.s32 0, %v1570
      %v1572 = vrot.slane %v1391, %v1571
      %1574 = vbcast.lane.b32.xlu0 %v1572, 256
      %v1575 = vpop.permute.xlu0 %1574
      %s1577 = sor.u32 256, 8
      %1578 = vbcast.lane.b32.xlu0 %v1572, %s1577
      %v1579 = vpop.permute.xlu0 %1578
      %v1580 = vlaneseq
      %v1581 = vshrl.u32 %v1580, 7
      %v1582 = vsub.s32 1, %v1581
      %v1583 = vrot.slane %v1391, %v1582
      %1585 = vbcast.lane.b32.xlu0 %v1583, 256
      %v1586 = vpop.permute.xlu0 %1585
      %s1588 = sor.u32 256, 8
      %1589 = vbcast.lane.b32.xlu0 %v1583, %s1588
      %v1590 = vpop.permute.xlu0 %1589
      %v1591 = vlaneseq
      %v1592 = vshrl.u32 %v1591, 7
      %v1593 = vsub.s32 2, %v1592
      %v1594 = vrot.slane %v1391, %v1593
      %1596 = vbcast.lane.b32.xlu0 %v1594, 256
      %v1597 = vpop.permute.xlu0 %1596
      %s1599 = sor.u32 256, 8
      %1600 = vbcast.lane.b32.xlu0 %v1594, %s1599
      %v1601 = vpop.permute.xlu0 %1600
      %v1602 = vlaneseq
      %v1603 = vshrl.u32 %v1602, 7
      %v1604 = vsub.s32 3, %v1603
      %v1605 = vrot.slane %v1391, %v1604
      %1607 = vbcast.lane.b32.xlu0 %v1605, 256
      %v1608 = vpop.permute.xlu0 %1607
      %s1610 = sor.u32 256, 8
      %1611 = vbcast.lane.b32.xlu0 %v1605, %s1610
      %v1612 = vpop.permute.xlu0 %1611
      %v1613 = vlaneseq
      %v1614 = vshrl.u32 %v1613, 7
      %v1615 = vsub.s32 4, %v1614
      %v1616 = vrot.slane %v1391, %v1615
      %1618 = vbcast.lane.b32.xlu0 %v1616, 256
      %v1619 = vpop.permute.xlu0 %1618
      %s1621 = sor.u32 256, 8
      %1622 = vbcast.lane.b32.xlu0 %v1616, %s1621
      %v1623 = vpop.permute.xlu0 %1622
      %v1624 = vlaneseq
      %v1625 = vshrl.u32 %v1624, 7
      %v1626 = vsub.s32 5, %v1625
      %v1627 = vrot.slane %v1391, %v1626
      %1629 = vbcast.lane.b32.xlu0 %v1627, 256
      %v1630 = vpop.permute.xlu0 %1629
      %s1632 = sor.u32 256, 8
      %1633 = vbcast.lane.b32.xlu0 %v1627, %s1632
      %v1634 = vpop.permute.xlu0 %1633
      %v1635 = vlaneseq
      %v1636 = vshrl.u32 %v1635, 7
      %v1637 = vsub.s32 6, %v1636
      %v1638 = vrot.slane %v1391, %v1637
      %1640 = vbcast.lane.b32.xlu0 %v1638, 256
      %v1641 = vpop.permute.xlu0 %1640
      %s1643 = sor.u32 256, 8
      %1644 = vbcast.lane.b32.xlu0 %v1638, %s1643
      %v1645 = vpop.permute.xlu0 %1644
      %v1646 = vlaneseq
      %v1647 = vshrl.u32 %v1646, 7
      %v1648 = vsub.s32 7, %v1647
      %v1649 = vrot.slane %v1391, %v1648
      %1651 = vbcast.lane.b32.xlu0 %v1649, 256
      %v1652 = vpop.permute.xlu0 %1651
      %s1654 = sor.u32 256, 8
      %1655 = vbcast.lane.b32.xlu0 %v1649, %s1654
      %v1656 = vpop.permute.xlu0 %1655
      %v1657 = vlaneseq
      %v1658 = vshrl.u32 %v1657, 7
      %v1659 = vsub.s32 0, %v1658
      %v1660 = vrot.slane %v1392, %v1659
      %1662 = vbcast.lane.b32.xlu0 %v1660, 256
      %v1663 = vpop.permute.xlu0 %1662
      %s1665 = sor.u32 256, 8
      %1666 = vbcast.lane.b32.xlu0 %v1660, %s1665
      %v1667 = vpop.permute.xlu0 %1666
      %v1668 = vlaneseq
      %v1669 = vshrl.u32 %v1668, 7
      %v1670 = vsub.s32 1, %v1669
      %v1671 = vrot.slane %v1392, %v1670
      %1673 = vbcast.lane.b32.xlu0 %v1671, 256
      %v1674 = vpop.permute.xlu0 %1673
      %s1676 = sor.u32 256, 8
      %1677 = vbcast.lane.b32.xlu0 %v1671, %s1676
      %v1678 = vpop.permute.xlu0 %1677
      %v1679 = vlaneseq
      %v1680 = vshrl.u32 %v1679, 7
      %v1681 = vsub.s32 2, %v1680
      %v1682 = vrot.slane %v1392, %v1681
      %1684 = vbcast.lane.b32.xlu0 %v1682, 256
      %v1685 = vpop.permute.xlu0 %1684
      %s1687 = sor.u32 256, 8
      %1688 = vbcast.lane.b32.xlu0 %v1682, %s1687
      %v1689 = vpop.permute.xlu0 %1688
      %v1690 = vlaneseq
      %v1691 = vshrl.u32 %v1690, 7
      %v1692 = vsub.s32 3, %v1691
      %v1693 = vrot.slane %v1392, %v1692
      %1695 = vbcast.lane.b32.xlu0 %v1693, 256
      %v1696 = vpop.permute.xlu0 %1695
      %s1698 = sor.u32 256, 8
      %1699 = vbcast.lane.b32.xlu0 %v1693, %s1698
      %v1700 = vpop.permute.xlu0 %1699
      %v1701 = vlaneseq
      %v1702 = vshrl.u32 %v1701, 7
      %v1703 = vsub.s32 4, %v1702
      %v1704 = vrot.slane %v1392, %v1703
      %1706 = vbcast.lane.b32.xlu0 %v1704, 256
      %v1707 = vpop.permute.xlu0 %1706
      %s1709 = sor.u32 256, 8
      %1710 = vbcast.lane.b32.xlu0 %v1704, %s1709
      %v1711 = vpop.permute.xlu0 %1710
      %v1712 = vlaneseq
      %v1713 = vshrl.u32 %v1712, 7
      %v1714 = vsub.s32 5, %v1713
      %v1715 = vrot.slane %v1392, %v1714
      %1717 = vbcast.lane.b32.xlu0 %v1715, 256
      %v1718 = vpop.permute.xlu0 %1717
      %s1720 = sor.u32 256, 8
      %1721 = vbcast.lane.b32.xlu0 %v1715, %s1720
      %v1722 = vpop.permute.xlu0 %1721
      %v1723 = vlaneseq
      %v1724 = vshrl.u32 %v1723, 7
      %v1725 = vsub.s32 6, %v1724
      %v1726 = vrot.slane %v1392, %v1725
      %1728 = vbcast.lane.b32.xlu0 %v1726, 256
      %v1729 = vpop.permute.xlu0 %1728
      %s1731 = sor.u32 256, 8
      %1732 = vbcast.lane.b32.xlu0 %v1726, %s1731
      %v1733 = vpop.permute.xlu0 %1732
      %v1734 = vlaneseq
      %v1735 = vshrl.u32 %v1734, 7
      %v1736 = vsub.s32 7, %v1735
      %v1737 = vrot.slane %v1392, %v1736
      %1739 = vbcast.lane.b32.xlu0 %v1737, 256
      %v1740 = vpop.permute.xlu0 %1739
      %s1742 = sor.u32 256, 8
      %1743 = vbcast.lane.b32.xlu0 %v1737, %s1742
      %v1744 = vpop.permute.xlu0 %1743
      %v1745 = vsel %vm639, %v1399, %v1575
      %v1746 = vsel %vm639, %v1403, %v1579
      %v1747 = vsel %vm639, %v1410, %v1586
      %v1748 = vsel %vm639, %v1414, %v1590
      %v1749 = vsel %vm639, %v1421, %v1597
      %v1750 = vsel %vm639, %v1425, %v1601
      %v1751 = vsel %vm639, %v1432, %v1608
      %v1752 = vsel %vm639, %v1436, %v1612
      %v1753 = vsel %vm639, %v1443, %v1619
      %v1754 = vsel %vm639, %v1447, %v1623
      %v1755 = vsel %vm639, %v1454, %v1630
      %v1756 = vsel %vm639, %v1458, %v1634
      %v1757 = vsel %vm639, %v1465, %v1641
      %v1758 = vsel %vm639, %v1469, %v1645
      %v1759 = vsel %vm639, %v1476, %v1652
      %v1760 = vsel %vm639, %v1480, %v1656
      %v1761 = vsel %vm639, %v1487, %v1663
      %v1762 = vsel %vm639, %v1491, %v1667
      %v1763 = vsel %vm639, %v1498, %v1674
      %v1764 = vsel %vm639, %v1502, %v1678
      %v1765 = vsel %vm639, %v1509, %v1685
      %v1766 = vsel %vm639, %v1513, %v1689
      %v1767 = vsel %vm639, %v1520, %v1696
      %v1768 = vsel %vm639, %v1524, %v1700
      %v1769 = vsel %vm639, %v1531, %v1707
      %v1770 = vsel %vm639, %v1535, %v1711
      %v1771 = vsel %vm639, %v1542, %v1718
      %v1772 = vsel %vm639, %v1546, %v1722
      %v1773 = vsel %vm639, %v1553, %v1729
      %v1774 = vsel %vm639, %v1557, %v1733
      %v1775 = vsel %vm639, %v1564, %v1740
      %v1776 = vsel %vm639, %v1568, %v1744
      %v1777 = vcombine.low %v1745, %v1749
      %v1778 = vcombine.high %v1745, %v1749
      %v1780 = vunpack.c.l.s4 1983009808
      %v1781 = vunpack.c.0.s8 %v1780
      %v1782 = vlaneseq
      %v1783 = vshrl.u32 %v1782, 7
      %v1784 = vsub.s32 %v1781, %v1783
      %v1785 = vrot.slane %v1777, %v1784
      %v1787 = vunpack.c.l.s4 1983009808
      %v1788 = vunpack.c.0.s8 %v1787
      %v1789 = vlaneseq
      %v1790 = vshrl.u32 %v1789, 7
      %v1791 = vsub.s32 %v1788, %v1790
      %v1792 = vrot.slane %v1778, %v1791
      %v1793 = vcombine.low %v1747, %v1751
      %v1794 = vcombine.high %v1747, %v1751
      %v1796 = vunpack.c.l.s4 1983009808
      %v1797 = vunpack.c.0.s8 %v1796
      %v1798 = vlaneseq
      %v1799 = vshrl.u32 %v1798, 7
      %v1800 = vsub.s32 %v1797, %v1799
      %v1801 = vrot.slane %v1793, %v1800
      %v1803 = vunpack.c.l.s4 1983009808
      %v1804 = vunpack.c.0.s8 %v1803
      %v1805 = vlaneseq
      %v1806 = vshrl.u32 %v1805, 7
      %v1807 = vsub.s32 %v1804, %v1806
      %v1808 = vrot.slane %v1794, %v1807
      %v1809 = vcombine.low %v1753, %v1757
      %v1810 = vcombine.high %v1753, %v1757
      %v1812 = vunpack.c.l.s4 1983009808
      %v1813 = vunpack.c.0.s8 %v1812
      %v1814 = vlaneseq
      %v1815 = vshrl.u32 %v1814, 7
      %v1816 = vsub.s32 %v1813, %v1815
      %v1817 = vrot.slane %v1809, %v1816
      %v1819 = vunpack.c.l.s4 1983009808
      %v1820 = vunpack.c.0.s8 %v1819
      %v1821 = vlaneseq
      %v1822 = vshrl.u32 %v1821, 7
      %v1823 = vsub.s32 %v1820, %v1822
      %v1824 = vrot.slane %v1810, %v1823
      %v1825 = vcombine.low %v1755, %v1759
      %v1826 = vcombine.high %v1755, %v1759
      %v1828 = vunpack.c.l.s4 1983009808
      %v1829 = vunpack.c.0.s8 %v1828
      %v1830 = vlaneseq
      %v1831 = vshrl.u32 %v1830, 7
      %v1832 = vsub.s32 %v1829, %v1831
      %v1833 = vrot.slane %v1825, %v1832
      %v1835 = vunpack.c.l.s4 1983009808
      %v1836 = vunpack.c.0.s8 %v1835
      %v1837 = vlaneseq
      %v1838 = vshrl.u32 %v1837, 7
      %v1839 = vsub.s32 %v1836, %v1838
      %v1840 = vrot.slane %v1826, %v1839
      %v1841 = vcombine.low %v1785, %v1801
      %v1842 = vcombine.high %v1785, %v1801
      %v1844 = vunpack.c.l.s4 1934713408
      %v1845 = vunpack.c.0.s8 %v1844
      %v1846 = vlaneseq
      %v1847 = vshrl.u32 %v1846, 7
      %v1848 = vsub.s32 %v1845, %v1847
      %v1849 = vrot.slane %v1841, %v1848
      %v1851 = vunpack.c.l.s4 1934713408
      %v1852 = vunpack.c.0.s8 %v1851
      %v1853 = vlaneseq
      %v1854 = vshrl.u32 %v1853, 7
      %v1855 = vsub.s32 %v1852, %v1854
      %v1856 = vrot.slane %v1842, %v1855
      %v1857 = vcombine.low %v1792, %v1808
      %v1858 = vcombine.high %v1792, %v1808
      %v1860 = vunpack.c.l.s4 1934713408
      %v1861 = vunpack.c.0.s8 %v1860
      %v1862 = vlaneseq
      %v1863 = vshrl.u32 %v1862, 7
      %v1864 = vsub.s32 %v1861, %v1863
      %v1865 = vrot.slane %v1857, %v1864
      %v1867 = vunpack.c.l.s4 1934713408
      %v1868 = vunpack.c.0.s8 %v1867
      %v1869 = vlaneseq
      %v1870 = vshrl.u32 %v1869, 7
      %v1871 = vsub.s32 %v1868, %v1870
      %v1872 = vrot.slane %v1858, %v1871
      %v1873 = vcombine.low %v1817, %v1833
      %v1874 = vcombine.high %v1817, %v1833
      %v1876 = vunpack.c.l.s4 1934713408
      %v1877 = vunpack.c.0.s8 %v1876
      %v1878 = vlaneseq
      %v1879 = vshrl.u32 %v1878, 7
      %v1880 = vsub.s32 %v1877, %v1879
      %v1881 = vrot.slane %v1873, %v1880
      %v1883 = vunpack.c.l.s4 1934713408
      %v1884 = vunpack.c.0.s8 %v1883
      %v1885 = vlaneseq
      %v1886 = vshrl.u32 %v1885, 7
      %v1887 = vsub.s32 %v1884, %v1886
      %v1888 = vrot.slane %v1874, %v1887
      %v1889 = vcombine.low %v1824, %v1840
      %v1890 = vcombine.high %v1824, %v1840
      %v1892 = vunpack.c.l.s4 1934713408
      %v1893 = vunpack.c.0.s8 %v1892
      %v1894 = vlaneseq
      %v1895 = vshrl.u32 %v1894, 7
      %v1896 = vsub.s32 %v1893, %v1895
      %v1897 = vrot.slane %v1889, %v1896
      %v1899 = vunpack.c.l.s4 1934713408
      %v1900 = vunpack.c.0.s8 %v1899
      %v1901 = vlaneseq
      %v1902 = vshrl.u32 %v1901, 7
      %v1903 = vsub.s32 %v1900, %v1902
      %v1904 = vrot.slane %v1890, %v1903
      %v1905 = vcombine.low %v1849, %v1881
      %v1906 = vcombine.high %v1849, %v1881
      %v1907 = vcombine.low %v1856, %v1888
      %v1908 = vcombine.high %v1856, %v1888
      %v1909 = vcombine.low %v1865, %v1897
      %v1910 = vcombine.high %v1865, %v1897
      %v1911 = vcombine.low %v1872, %v1904
      %v1912 = vcombine.high %v1872, %v1904
      %v1913 = vcombine.low %v1761, %v1765
      %v1914 = vcombine.high %v1761, %v1765
      %v1916 = vunpack.c.l.s4 1983009808
      %v1917 = vunpack.c.0.s8 %v1916
      %v1918 = vlaneseq
      %v1919 = vshrl.u32 %v1918, 7
      %v1920 = vsub.s32 %v1917, %v1919
      %v1921 = vrot.slane %v1913, %v1920
      %v1923 = vunpack.c.l.s4 1983009808
      %v1924 = vunpack.c.0.s8 %v1923
      %v1925 = vlaneseq
      %v1926 = vshrl.u32 %v1925, 7
      %v1927 = vsub.s32 %v1924, %v1926
      %v1928 = vrot.slane %v1914, %v1927
      %v1929 = vcombine.low %v1763, %v1767
      %v1930 = vcombine.high %v1763, %v1767
      %v1932 = vunpack.c.l.s4 1983009808
      %v1933 = vunpack.c.0.s8 %v1932
      %v1934 = vlaneseq
      %v1935 = vshrl.u32 %v1934, 7
      %v1936 = vsub.s32 %v1933, %v1935
      %v1937 = vrot.slane %v1929, %v1936
      %v1939 = vunpack.c.l.s4 1983009808
      %v1940 = vunpack.c.0.s8 %v1939
      %v1941 = vlaneseq
      %v1942 = vshrl.u32 %v1941, 7
      %v1943 = vsub.s32 %v1940, %v1942
      %v1944 = vrot.slane %v1930, %v1943
      %v1945 = vcombine.low %v1769, %v1773
      %v1946 = vcombine.high %v1769, %v1773
      %v1948 = vunpack.c.l.s4 1983009808
      %v1949 = vunpack.c.0.s8 %v1948
      %v1950 = vlaneseq
      %v1951 = vshrl.u32 %v1950, 7
      %v1952 = vsub.s32 %v1949, %v1951
      %v1953 = vrot.slane %v1945, %v1952
      %v1955 = vunpack.c.l.s4 1983009808
      %v1956 = vunpack.c.0.s8 %v1955
      %v1957 = vlaneseq
      %v1958 = vshrl.u32 %v1957, 7
      %v1959 = vsub.s32 %v1956, %v1958
      %v1960 = vrot.slane %v1946, %v1959
      %v1961 = vcombine.low %v1771, %v1775
      %v1962 = vcombine.high %v1771, %v1775
      %v1964 = vunpack.c.l.s4 1983009808
      %v1965 = vunpack.c.0.s8 %v1964
      %v1966 = vlaneseq
      %v1967 = vshrl.u32 %v1966, 7
      %v1968 = vsub.s32 %v1965, %v1967
      %v1969 = vrot.slane %v1961, %v1968
      %v1971 = vunpack.c.l.s4 1983009808
      %v1972 = vunpack.c.0.s8 %v1971
      %v1973 = vlaneseq
      %v1974 = vshrl.u32 %v1973, 7
      %v1975 = vsub.s32 %v1972, %v1974
      %v1976 = vrot.slane %v1962, %v1975
      %v1977 = vcombine.low %v1921, %v1937
      %v1978 = vcombine.high %v1921, %v1937
      %v1980 = vunpack.c.l.s4 1934713408
      %v1981 = vunpack.c.0.s8 %v1980
      %v1982 = vlaneseq
      %v1983 = vshrl.u32 %v1982, 7
      %v1984 = vsub.s32 %v1981, %v1983
      %v1985 = vrot.slane %v1977, %v1984
      %v1987 = vunpack.c.l.s4 1934713408
      %v1988 = vunpack.c.0.s8 %v1987
      %v1989 = vlaneseq
      %v1990 = vshrl.u32 %v1989, 7
      %v1991 = vsub.s32 %v1988, %v1990
      %v1992 = vrot.slane %v1978, %v1991
      %v1993 = vcombine.low %v1928, %v1944
      %v1994 = vcombine.high %v1928, %v1944
      %v1996 = vunpack.c.l.s4 1934713408
      %v1997 = vunpack.c.0.s8 %v1996
      %v1998 = vlaneseq
      %v1999 = vshrl.u32 %v1998, 7
      %v2000 = vsub.s32 %v1997, %v1999
      %v2001 = vrot.slane %v1993, %v2000
      %v2003 = vunpack.c.l.s4 1934713408
      %v2004 = vunpack.c.0.s8 %v2003
      %v2005 = vlaneseq
      %v2006 = vshrl.u32 %v2005, 7
      %v2007 = vsub.s32 %v2004, %v2006
      %v2008 = vrot.slane %v1994, %v2007
      %v2009 = vcombine.low %v1953, %v1969
      %v2010 = vcombine.high %v1953, %v1969
      %v2012 = vunpack.c.l.s4 1934713408
      %v2013 = vunpack.c.0.s8 %v2012
      %v2014 = vlaneseq
      %v2015 = vshrl.u32 %v2014, 7
      %v2016 = vsub.s32 %v2013, %v2015
      %v2017 = vrot.slane %v2009, %v2016
      %v2019 = vunpack.c.l.s4 1934713408
      %v2020 = vunpack.c.0.s8 %v2019
      %v2021 = vlaneseq
      %v2022 = vshrl.u32 %v2021, 7
      %v2023 = vsub.s32 %v2020, %v2022
      %v2024 = vrot.slane %v2010, %v2023
      %v2025 = vcombine.low %v1960, %v1976
      %v2026 = vcombine.high %v1960, %v1976
      %v2028 = vunpack.c.l.s4 1934713408
      %v2029 = vunpack.c.0.s8 %v2028
      %v2030 = vlaneseq
      %v2031 = vshrl.u32 %v2030, 7
      %v2032 = vsub.s32 %v2029, %v2031
      %v2033 = vrot.slane %v2025, %v2032
      %v2035 = vunpack.c.l.s4 1934713408
      %v2036 = vunpack.c.0.s8 %v2035
      %v2037 = vlaneseq
      %v2038 = vshrl.u32 %v2037, 7
      %v2039 = vsub.s32 %v2036, %v2038
      %v2040 = vrot.slane %v2026, %v2039
      %v2041 = vcombine.low %v1985, %v2017
      %v2042 = vcombine.high %v1985, %v2017
      %v2043 = vcombine.low %v1992, %v2024
      %v2044 = vcombine.high %v1992, %v2024
      %v2045 = vcombine.low %v2001, %v2033
      %v2046 = vcombine.high %v2001, %v2033
      %v2047 = vcombine.low %v2008, %v2040
      %v2048 = vcombine.high %v2008, %v2040
      %v2049 = vcombine.low %v1746, %v1750
      %v2050 = vcombine.high %v1746, %v1750
      %v2052 = vunpack.c.l.s4 1983009808
      %v2053 = vunpack.c.0.s8 %v2052
      %v2054 = vlaneseq
      %v2055 = vshrl.u32 %v2054, 7
      %v2056 = vsub.s32 %v2053, %v2055
      %v2057 = vrot.slane %v2049, %v2056
      %v2059 = vunpack.c.l.s4 1983009808
      %v2060 = vunpack.c.0.s8 %v2059
      %v2061 = vlaneseq
      %v2062 = vshrl.u32 %v2061, 7
      %v2063 = vsub.s32 %v2060, %v2062
      %v2064 = vrot.slane %v2050, %v2063
      %v2065 = vcombine.low %v1748, %v1752
      %v2066 = vcombine.high %v1748, %v1752
      %v2068 = vunpack.c.l.s4 1983009808
      %v2069 = vunpack.c.0.s8 %v2068
      %v2070 = vlaneseq
      %v2071 = vshrl.u32 %v2070, 7
      %v2072 = vsub.s32 %v2069, %v2071
      %v2073 = vrot.slane %v2065, %v2072
      %v2075 = vunpack.c.l.s4 1983009808
      %v2076 = vunpack.c.0.s8 %v2075
      %v2077 = vlaneseq
      %v2078 = vshrl.u32 %v2077, 7
      %v2079 = vsub.s32 %v2076, %v2078
      %v2080 = vrot.slane %v2066, %v2079
      %v2081 = vcombine.low %v1754, %v1758
      %v2082 = vcombine.high %v1754, %v1758
      %v2084 = vunpack.c.l.s4 1983009808
      %v2085 = vunpack.c.0.s8 %v2084
      %v2086 = vlaneseq
      %v2087 = vshrl.u32 %v2086, 7
      %v2088 = vsub.s32 %v2085, %v2087
      %v2089 = vrot.slane %v2081, %v2088
      %v2091 = vunpack.c.l.s4 1983009808
      %v2092 = vunpack.c.0.s8 %v2091
      %v2093 = vlaneseq
      %v2094 = vshrl.u32 %v2093, 7
      %v2095 = vsub.s32 %v2092, %v2094
      %v2096 = vrot.slane %v2082, %v2095
      %v2097 = vcombine.low %v1756, %v1760
      %v2098 = vcombine.high %v1756, %v1760
      %v2100 = vunpack.c.l.s4 1983009808
      %v2101 = vunpack.c.0.s8 %v2100
      %v2102 = vlaneseq
      %v2103 = vshrl.u32 %v2102, 7
      %v2104 = vsub.s32 %v2101, %v2103
      %v2105 = vrot.slane %v2097, %v2104
      %v2107 = vunpack.c.l.s4 1983009808
      %v2108 = vunpack.c.0.s8 %v2107
      %v2109 = vlaneseq
      %v2110 = vshrl.u32 %v2109, 7
      %v2111 = vsub.s32 %v2108, %v2110
      %v2112 = vrot.slane %v2098, %v2111
      %v2113 = vcombine.low %v2057, %v2073
      %v2114 = vcombine.high %v2057, %v2073
      %v2116 = vunpack.c.l.s4 1934713408
      %v2117 = vunpack.c.0.s8 %v2116
      %v2118 = vlaneseq
      %v2119 = vshrl.u32 %v2118, 7
      %v2120 = vsub.s32 %v2117, %v2119
      %v2121 = vrot.slane %v2113, %v2120
      %v2123 = vunpack.c.l.s4 1934713408
      %v2124 = vunpack.c.0.s8 %v2123
      %v2125 = vlaneseq
      %v2126 = vshrl.u32 %v2125, 7
      %v2127 = vsub.s32 %v2124, %v2126
      %v2128 = vrot.slane %v2114, %v2127
      %v2129 = vcombine.low %v2064, %v2080
      %v2130 = vcombine.high %v2064, %v2080
      %v2132 = vunpack.c.l.s4 1934713408
      %v2133 = vunpack.c.0.s8 %v2132
      %v2134 = vlaneseq
      %v2135 = vshrl.u32 %v2134, 7
      %v2136 = vsub.s32 %v2133, %v2135
      %v2137 = vrot.slane %v2129, %v2136
      %v2139 = vunpack.c.l.s4 1934713408
      %v2140 = vunpack.c.0.s8 %v2139
      %v2141 = vlaneseq
      %v2142 = vshrl.u32 %v2141, 7
      %v2143 = vsub.s32 %v2140, %v2142
      %v2144 = vrot.slane %v2130, %v2143
      %v2145 = vcombine.low %v2089, %v2105
      %v2146 = vcombine.high %v2089, %v2105
      %v2148 = vunpack.c.l.s4 1934713408
      %v2149 = vunpack.c.0.s8 %v2148
      %v2150 = vlaneseq
      %v2151 = vshrl.u32 %v2150, 7
      %v2152 = vsub.s32 %v2149, %v2151
      %v2153 = vrot.slane %v2145, %v2152
      %v2155 = vunpack.c.l.s4 1934713408
      %v2156 = vunpack.c.0.s8 %v2155
      %v2157 = vlaneseq
      %v2158 = vshrl.u32 %v2157, 7
      %v2159 = vsub.s32 %v2156, %v2158
      %v2160 = vrot.slane %v2146, %v2159
      %v2161 = vcombine.low %v2096, %v2112
      %v2162 = vcombine.high %v2096, %v2112
      %v2164 = vunpack.c.l.s4 1934713408
      %v2165 = vunpack.c.0.s8 %v2164
      %v2166 = vlaneseq
      %v2167 = vshrl.u32 %v2166, 7
      %v2168 = vsub.s32 %v2165, %v2167
      %v2169 = vrot.slane %v2161, %v2168
      %v2171 = vunpack.c.l.s4 1934713408
      %v2172 = vunpack.c.0.s8 %v2171
      %v2173 = vlaneseq
      %v2174 = vshrl.u32 %v2173, 7
      %v2175 = vsub.s32 %v2172, %v2174
      %v2176 = vrot.slane %v2162, %v2175
      %v2177 = vcombine.low %v2121, %v2153
      %v2178 = vcombine.high %v2121, %v2153
      %v2179 = vcombine.low %v2128, %v2160
      %v2180 = vcombine.high %v2128, %v2160
      %v2181 = vcombine.low %v2137, %v2169
      %v2182 = vcombine.high %v2137, %v2169
      %v2183 = vcombine.low %v2144, %v2176
      %v2184 = vcombine.high %v2144, %v2176
      %v2185 = vcombine.low %v1762, %v1766
      %v2186 = vcombine.high %v1762, %v1766
      %v2188 = vunpack.c.l.s4 1983009808
      %v2189 = vunpack.c.0.s8 %v2188
      %v2190 = vlaneseq
      %v2191 = vshrl.u32 %v2190, 7
      %v2192 = vsub.s32 %v2189, %v2191
      %v2193 = vrot.slane %v2185, %v2192
      %v2195 = vunpack.c.l.s4 1983009808
      %v2196 = vunpack.c.0.s8 %v2195
      %v2197 = vlaneseq
      %v2198 = vshrl.u32 %v2197, 7
      %v2199 = vsub.s32 %v2196, %v2198
      %v2200 = vrot.slane %v2186, %v2199
      %v2201 = vcombine.low %v1764, %v1768
      %v2202 = vcombine.high %v1764, %v1768
      %v2204 = vunpack.c.l.s4 1983009808
      %v2205 = vunpack.c.0.s8 %v2204
      %v2206 = vlaneseq
      %v2207 = vshrl.u32 %v2206, 7
      %v2208 = vsub.s32 %v2205, %v2207
      %v2209 = vrot.slane %v2201, %v2208
      %v2211 = vunpack.c.l.s4 1983009808
      %v2212 = vunpack.c.0.s8 %v2211
      %v2213 = vlaneseq
      %v2214 = vshrl.u32 %v2213, 7
      %v2215 = vsub.s32 %v2212, %v2214
      %v2216 = vrot.slane %v2202, %v2215
      %v2217 = vcombine.low %v1770, %v1774
      %v2218 = vcombine.high %v1770, %v1774
      %v2220 = vunpack.c.l.s4 1983009808
      %v2221 = vunpack.c.0.s8 %v2220
      %v2222 = vlaneseq
      %v2223 = vshrl.u32 %v2222, 7
      %v2224 = vsub.s32 %v2221, %v2223
      %v2225 = vrot.slane %v2217, %v2224
      %v2227 = vunpack.c.l.s4 1983009808
      %v2228 = vunpack.c.0.s8 %v2227
      %v2229 = vlaneseq
      %v2230 = vshrl.u32 %v2229, 7
      %v2231 = vsub.s32 %v2228, %v2230
      %v2232 = vrot.slane %v2218, %v2231
      %v2233 = vcombine.low %v1772, %v1776
      %v2234 = vcombine.high %v1772, %v1776
      %v2236 = vunpack.c.l.s4 1983009808
      %v2237 = vunpack.c.0.s8 %v2236
      %v2238 = vlaneseq
      %v2239 = vshrl.u32 %v2238, 7
      %v2240 = vsub.s32 %v2237, %v2239
      %v2241 = vrot.slane %v2233, %v2240
      %v2243 = vunpack.c.l.s4 1983009808
      %v2244 = vunpack.c.0.s8 %v2243
      %v2245 = vlaneseq
      %v2246 = vshrl.u32 %v2245, 7
      %v2247 = vsub.s32 %v2244, %v2246
      %v2248 = vrot.slane %v2234, %v2247
      %v2249 = vcombine.low %v2193, %v2209
      %v2250 = vcombine.high %v2193, %v2209
      %v2252 = vunpack.c.l.s4 1934713408
      %v2253 = vunpack.c.0.s8 %v2252
      %v2254 = vlaneseq
      %v2255 = vshrl.u32 %v2254, 7
      %v2256 = vsub.s32 %v2253, %v2255
      %v2257 = vrot.slane %v2249, %v2256
      %v2259 = vunpack.c.l.s4 1934713408
      %v2260 = vunpack.c.0.s8 %v2259
      %v2261 = vlaneseq
      %v2262 = vshrl.u32 %v2261, 7
      %v2263 = vsub.s32 %v2260, %v2262
      %v2264 = vrot.slane %v2250, %v2263
      %v2265 = vcombine.low %v2200, %v2216
      %v2266 = vcombine.high %v2200, %v2216
      %v2268 = vunpack.c.l.s4 1934713408
      %v2269 = vunpack.c.0.s8 %v2268
      %v2270 = vlaneseq
      %v2271 = vshrl.u32 %v2270, 7
      %v2272 = vsub.s32 %v2269, %v2271
      %v2273 = vrot.slane %v2265, %v2272
      %v2275 = vunpack.c.l.s4 1934713408
      %v2276 = vunpack.c.0.s8 %v2275
      %v2277 = vlaneseq
      %v2278 = vshrl.u32 %v2277, 7
      %v2279 = vsub.s32 %v2276, %v2278
      %v2280 = vrot.slane %v2266, %v2279
      %v2281 = vcombine.low %v2225, %v2241
      %v2282 = vcombine.high %v2225, %v2241
      %v2284 = vunpack.c.l.s4 1934713408
      %v2285 = vunpack.c.0.s8 %v2284
      %v2286 = vlaneseq
      %v2287 = vshrl.u32 %v2286, 7
      %v2288 = vsub.s32 %v2285, %v2287
      %v2289 = vrot.slane %v2281, %v2288
      %v2291 = vunpack.c.l.s4 1934713408
      %v2292 = vunpack.c.0.s8 %v2291
      %v2293 = vlaneseq
      %v2294 = vshrl.u32 %v2293, 7
      %v2295 = vsub.s32 %v2292, %v2294
      %v2296 = vrot.slane %v2282, %v2295
      %v2297 = vcombine.low %v2232, %v2248
      %v2298 = vcombine.high %v2232, %v2248
      %v2300 = vunpack.c.l.s4 1934713408
      %v2301 = vunpack.c.0.s8 %v2300
      %v2302 = vlaneseq
      %v2303 = vshrl.u32 %v2302, 7
      %v2304 = vsub.s32 %v2301, %v2303
      %v2305 = vrot.slane %v2297, %v2304
      %v2307 = vunpack.c.l.s4 1934713408
      %v2308 = vunpack.c.0.s8 %v2307
      %v2309 = vlaneseq
      %v2310 = vshrl.u32 %v2309, 7
      %v2311 = vsub.s32 %v2308, %v2310
      %v2312 = vrot.slane %v2298, %v2311
      %v2313 = vcombine.low %v2257, %v2289
      %v2314 = vcombine.high %v2257, %v2289
      %v2315 = vcombine.low %v2264, %v2296
      %v2316 = vcombine.high %v2264, %v2296
      %v2317 = vcombine.low %v2273, %v2305
      %v2318 = vcombine.high %v2273, %v2305
      %v2319 = vcombine.low %v2280, %v2312
      %v2320 = vcombine.high %v2280, %v2312
      %2323 = vrot.lane.b32.xlu0 %v1906, 2
      %v2324 = vpop.permute.xlu0 %2323
      %2325 = vrot.lane.b32.xlu0 %v2042, 2
      %v2326 = vpop.permute.xlu0 %2325
      %2331 = vrot.lane.b32.xlu0 %v1907, 4
      %v2332 = vpop.permute.xlu0 %2331
      %2333 = vrot.lane.b32.xlu0 %v2043, 4
      %v2334 = vpop.permute.xlu0 %2333
      %2339 = vrot.lane.b32.xlu0 %v1908, 6
      %v2340 = vpop.permute.xlu0 %2339
      %2341 = vrot.lane.b32.xlu0 %v2044, 6
      %v2342 = vpop.permute.xlu0 %2341
      %2347 = vrot.lane.b32.xlu0 %v1909, 8
      %v2348 = vpop.permute.xlu0 %2347
      %2349 = vrot.lane.b32.xlu0 %v2045, 8
      %v2350 = vpop.permute.xlu0 %2349
      %2355 = vrot.lane.b32.xlu0 %v1910, 10
      %v2356 = vpop.permute.xlu0 %2355
      %2357 = vrot.lane.b32.xlu0 %v2046, 10
      %v2358 = vpop.permute.xlu0 %2357
      %2363 = vrot.lane.b32.xlu0 %v1911, 12
      %v2364 = vpop.permute.xlu0 %2363
      %2365 = vrot.lane.b32.xlu0 %v2047, 12
      %v2366 = vpop.permute.xlu0 %2365
      %2371 = vrot.lane.b32.xlu0 %v1912, 14
      %v2372 = vpop.permute.xlu0 %2371
      %2373 = vrot.lane.b32.xlu0 %v2048, 14
      %v2374 = vpop.permute.xlu0 %2373
      %2379 = vrot.lane.b32.xlu0 %v2177, 16
      %v2380 = vpop.permute.xlu0 %2379
      %2381 = vrot.lane.b32.xlu0 %v2313, 16
      %v2382 = vpop.permute.xlu0 %2381
      %2387 = vrot.lane.b32.xlu0 %v2178, 18
      %v2388 = vpop.permute.xlu0 %2387
      %2389 = vrot.lane.b32.xlu0 %v2314, 18
      %v2390 = vpop.permute.xlu0 %2389
      %2395 = vrot.lane.b32.xlu0 %v2179, 20
      %v2396 = vpop.permute.xlu0 %2395
      %2397 = vrot.lane.b32.xlu0 %v2315, 20
      %v2398 = vpop.permute.xlu0 %2397
      %2403 = vrot.lane.b32.xlu0 %v2180, 22
      %v2404 = vpop.permute.xlu0 %2403
      %2405 = vrot.lane.b32.xlu0 %v2316, 22
      %v2406 = vpop.permute.xlu0 %2405
      %2411 = vrot.lane.b32.xlu0 %v2181, 24
      %v2412 = vpop.permute.xlu0 %2411
      %2413 = vrot.lane.b32.xlu0 %v2317, 24
      %v2414 = vpop.permute.xlu0 %2413
      %2419 = vrot.lane.b32.xlu0 %v2182, 26
      %v2420 = vpop.permute.xlu0 %2419
      %2421 = vrot.lane.b32.xlu0 %v2318, 26
      %v2422 = vpop.permute.xlu0 %2421
      %2427 = vrot.lane.b32.xlu0 %v2183, 28
      %v2428 = vpop.permute.xlu0 %2427
      %2429 = vrot.lane.b32.xlu0 %v2319, 28
      %v2430 = vpop.permute.xlu0 %2429
      %2435 = vrot.lane.b32.xlu0 %v2184, 30
      %v2436 = vpop.permute.xlu0 %2435
      %2437 = vrot.lane.b32.xlu0 %v2320, 30
      %v2438 = vpop.permute.xlu0 %2437
      %v2441 = vsel %vm1336, %v1905, %v2324
      %v2442 = vsel %vm1336, %v2041, %v2326
      %v2443 = vsel %vm1339, %v2441, %v2332
      %v2444 = vsel %vm1339, %v2442, %v2334
      %v2445 = vsel %vm1342, %v2443, %v2340
      %v2446 = vsel %vm1342, %v2444, %v2342
      %v2447 = vsel %vm1345, %v2445, %v2348
      %v2448 = vsel %vm1345, %v2446, %v2350
      %v2449 = vsel %vm1348, %v2447, %v2356
      %v2450 = vsel %vm1348, %v2448, %v2358
      %v2451 = vsel %vm1351, %v2449, %v2364
      %v2452 = vsel %vm1351, %v2450, %v2366
      %v2453 = vsel %vm1354, %v2451, %v2372
      %v2454 = vsel %vm1354, %v2452, %v2374
      %v2455 = vsel %vm1357, %v2453, %v2380
      %v2456 = vsel %vm1357, %v2454, %v2382
      %v2457 = vsel %vm1360, %v2455, %v2388
      %v2458 = vsel %vm1360, %v2456, %v2390
      %v2459 = vsel %vm1363, %v2457, %v2396
      %v2460 = vsel %vm1363, %v2458, %v2398
      %v2461 = vsel %vm1366, %v2459, %v2404
      %v2462 = vsel %vm1366, %v2460, %v2406
      %v2463 = vsel %vm1369, %v2461, %v2412
      %v2464 = vsel %vm1369, %v2462, %v2414
      %v2465 = vsel %vm1372, %v2463, %v2420
      %v2466 = vsel %vm1372, %v2464, %v2422
      %v2467 = vsel %vm1375, %v2465, %v2428
      %v2468 = vsel %vm1375, %v2466, %v2430
      %v2469 = vsel %vm1378, %v2467, %v2436
      %v2470 = vsel %vm1378, %v2468, %v2438
      %2473 = vrot.lane.b32.xlu0 %v2469, 32
      %v2474 = vpop.permute.xlu0 %2473
      %2475 = vrot.lane.b32.xlu0 %v2470, 32
      %v2476 = vpop.permute.xlu0 %2475
      %vm2479 = vcmask 261120
      %v2480 = vsel %vm2479, %v1379, %v2474
      %v2481 = vsel %vm2479, %v1380, %v2476
      %vm2482 = vcmask 523264
      %2483 = vst.msk [vmem:[%s265] sm:$0xff] %vm2482, %v2480
      %2484 = vst.msk [vmem:[%s265 + $0x8] sm:$0xff] %vm2482, %v2481
      %s2485 = smul.u32 2, %s15
      %p2486 = scmp.lt.s32.totalorder %s2485, 15
      %s2487 = scalar_select %p2486, %s2485, 15
      %s2488 = smul.addr %s2487, 8
      %s2489 = scalar_lea.vmem %s4, %s2488
      // Predicated region
      $region37: #{tpu_custom_call.1} parent=35 // pred_check
        %p2490 = pneg %p137
      $region38: #{tpu_custom_call.1} parent=35 // pred_check_branch
        %2492 = sbr.rel (%p2490) target = $region40
      $region39: #{tpu_custom_call.1} parent=35 // pred_region
        %s2493 = smul.u32 2, %s15
      $region40: #{tpu_custom_call.1} parent=35 // pred_fallthru
        _
    $region36: #{tpu_custom_call.1} parent=5 // pred_fallthru
      _
    %p2494 = scmp.le.s32.totalorder 2, %s10
    // Predicated region
    $region41: #{tpu_custom_call.1} parent=5 // pred_check
      %p2495 = pneg %p2494
    $region42: #{tpu_custom_call.1} parent=5 // pred_check_branch
      %2497 = sbr.rel (%p2495) target = $region44
    $region43: #{tpu_custom_call.1} parent=5 // pred_region
      %s2498 = ssub.s32 %s10, 2
      // Predicated region
      $region45: #{tpu_custom_call.1} parent=43 // pred_check
        %p2499 = pneg %p143
      $region46: #{tpu_custom_call.1} parent=43 // pred_check_branch
        %2501 = sbr.rel (%p2499) target = $region48
      $region47: #{tpu_custom_call.1} parent=43 // pred_region
        %s2502 = smul.u32 2, %s16
        %p2503 = scmp.lt.s32.totalorder %s2502, 15
        %s2504 = scalar_select %p2503, %s2502, 15
        %s2505 = smul.addr %s2504, 8
        %s2506 = scalar_lea.vmem %s4, %s2505
      $region48: #{tpu_custom_call.1} parent=43 // pred_fallthru
        _
    $region44: #{tpu_custom_call.1} parent=5 // pred_fallthru
      _
  $region6: #{tpu_custom_call.1} parent=0 // loop_footer
    %s14 = sadd.s32 1, %s10
  $region7: #{tpu_custom_call.1} parent=0 // loop_footer_branch
    %9 = sbr.rel target = $region3
  $region8: #{tpu_custom_call.1} parent=0 // loop_exit
    _

</llo_original>
